<compile_context>
chip_gen: v5e
topology: v5e:2x2
jax: 0.10.0
libtpu: 0.0.40
codegen_flags: <defaults>
</compile_context>

<pallas_src>
import math
import functools

import jax
import jax.numpy as jnp
from jax.experimental import pallas as pl
from jax.experimental.pallas import tpu as pltpu

LANE = 128


def _ssp(x):
    # shifted_softplus(x) = softplus(x) - log(2); ssp(0) == 0 exactly.
    return jax.nn.softplus(x) - math.log(2.0)


def _round_up(n, m):
    return ((n + m - 1) // m) * m


def _pad_to(x, axis, target, value=0.0):
    pad = target - x.shape[axis]
    if pad <= 0:
        return x
    widths = [(0, 0)] * x.ndim
    widths[axis] = (0, pad)
    return jnp.pad(x, widths, constant_values=value)


# --------------------------------------------------------------------------
# Fused kernel: grid = (layer, pair_tile)
# --------------------------------------------------------------------------
def _cfconv_kernel(pairs_ref, idxi_ref, geo_ref, x0_ref, w_ref, b_ref,
                   out_ref, xf_scr, agg_scr, *, cutoff, n_atoms_pad):
    layer = pl.program_id(0)
    tile = pl.program_id(1)
    n_tiles = pl.num_programs(1)

    # One-time init: load the embedding into the resident atom state (out_ref
    # has a constant index map, so its VMEM block persists across the grid).
    @pl.when(jnp.logical_and(layer == 0, tile == 0))
    def _():
        out_ref[...] = x0_ref[...]

    # Per-layer init: in2f projection (once per layer) + zero the accumulator.
    @pl.when(tile == 0)
    def _():
        xf_scr[...] = jnp.dot(out_ref[...], w_ref[0],
                              preferred_element_type=jnp.float32)
        agg_scr[...] = jnp.zeros_like(agg_scr)

    # --- geometry for this pair tile (never touches HBM beyond the packed
    #     [TP, 8] block) ---
    pairs = pairs_ref[...]                                  # [TP, 8]
    d = pairs[:, 0:1]                                       # [TP, 1]
    idx_j = pairs[:, 1:2].astype(jnp.int32)                 # [TP, 1]
    coeff = geo_ref[0:1, :]                                 # [1, F]
    offs = geo_ref[1:2, :]                                  # [1, F]

    diff = d - offs                                         # [TP, F]
    f_ij = jnp.exp(coeff * diff * diff)                     # padded lanes -> 0
    rcut = 0.5 * (jnp.cos(d * (math.pi / cutoff)) + 1.0)    # [TP, 1]
    rcut = rcut * (d < cutoff).astype(jnp.float32)

    # --- filter network ---
    h = _ssp(jnp.dot(f_ij, w_ref[1], preferred_element_type=jnp.float32)
             + b_ref[0:1, :])
    wij = (jnp.dot(h, w_ref[2], preferred_element_type=jnp.float32)
           + b_ref[1:2, :]) * rcut

    # --- gather via one-hot [TP, A_pad] (padded idx == n_atoms_pad never
    #     matches the iota, so padded pairs contribute exactly zero) ---
    tp = pairs.shape[0]
    iota_j = jax.lax.broadcasted_iota(jnp.int32, (tp, n_atoms_pad), 1)
    oh_j = (idx_j == iota_j).astype(jnp.float32)            # [TP, A]
    x_j = jnp.dot(oh_j, xf_scr[...],
                  preferred_element_type=jnp.float32)       # [TP, F]
    x_ij = x_j * wij

    # --- scatter-add via a one-hot built already transposed ([A_pad, TP]):
    #     plain last-dim contraction, no XLU transpose on the critical path ---
    idx_i = idxi_ref[...].astype(jnp.int32)                 # [1, TP]
    iota_i = jax.lax.broadcasted_iota(jnp.int32, (n_atoms_pad, tp), 0)
    oh_i_t = (idx_i == iota_i).astype(jnp.float32)          # [A, TP]
    agg_scr[...] += jnp.dot(oh_i_t, x_ij,
                            preferred_element_type=jnp.float32)

    # --- end of layer: f2out + residual, update resident atom state ---
    @pl.when(tile == n_tiles - 1)
    def _():
        y = _ssp(jnp.dot(agg_scr[...], w_ref[3],
                         preferred_element_type=jnp.float32) + b_ref[2:3, :])
        out_ref[...] = (out_ref[...]
                        + jnp.dot(y, w_ref[4],
                                  preferred_element_type=jnp.float32)
                        + b_ref[3:4, :])


# --------------------------------------------------------------------------
# Wrapper: padding, weight stacking, one pallas_call for the whole forward
# --------------------------------------------------------------------------
def cfconv_forward(R, Z, idx_i, idx_j, emb_table, offsets, widths, cutoff,
                   interaction_params, *, pair_tile=256):
    n_atoms = R.shape[0]
    n_pairs = idx_i.shape[0]
    n_layers = len(interaction_params)
    fa = emb_table.shape[1]
    ff = interaction_params[0]["w_in2f"].shape[1]
    d_feat = offsets.shape[0]

    # Single lane-dense pad for atom features / filters / distance features.
    F = _round_up(max(fa, ff, d_feat), LANE)
    # Atom axis padded to a lane multiple: lane-dense one-hots, 128-aligned K.
    a_p = _round_up(n_atoms, LANE)

    if n_pairs <= pair_tile:
        tp = _round_up(max(n_pairs, 8), 8)
        p_pad = tp
    else:
        tp = _round_up(pair_tile, LANE)      # multi-tile lane blocks need 128
        p_pad = _round_up(n_pairs, tp)
    n_tiles = p_pad // tp

    # Pair geometry in the wrapper.  Packed layouts:
    #   pairs   [P, 8]  lane0 = d, lane1 = idx_j (pairs on sublanes, gather one-hot)
    #   idxi    [1, P]  idx_i     (pairs on lanes, transposed scatter one-hot)
    rij = R[idx_j] - R[idx_i]
    d_ij = jnp.sqrt(jnp.sum(rij * rij, axis=1)).astype(jnp.float32)
    d_pad = jnp.full((p_pad,), cutoff + 1.0, jnp.float32).at[:n_pairs].set(d_ij)
    idxj_pad = jnp.full((p_pad,), a_p, jnp.float32).at[:n_pairs].set(
        idx_j.astype(jnp.float32))
    idxi_pad = jnp.full((p_pad,), a_p, jnp.float32).at[:n_pairs].set(
        idx_i.astype(jnp.float32))
    pairs = (jnp.zeros((p_pad, 8), jnp.float32)
             .at[:, 0].set(d_pad)
             .at[:, 1].set(idxj_pad))
    idxi_row = idxi_pad.reshape(1, p_pad)

    # Row 0: gaussian coeffs (pad -1), row 1: offsets (pad 1e6) so padded
    # distance-feature lanes of f_ij are exactly exp(-1e12) == 0.
    coeff = (-0.5 / (widths.astype(jnp.float32) ** 2)).reshape(1, d_feat)
    geo = jnp.concatenate(
        [_pad_to(coeff, 1, F, value=-1.0),
         _pad_to(offsets.astype(jnp.float32).reshape(1, d_feat), 1, F, value=1e6)],
        axis=0)

    x0 = _pad_to(_pad_to(emb_table[Z].astype(jnp.float32), 0, a_p), 1, F)

    # Stack per-layer weights/biases: 2 DMAs per layer boundary instead of 9.
    # Zero padding keeps padded lanes/rows inert (ssp(0) == 0).
    def padw(w):
        return _pad_to(_pad_to(w.astype(jnp.float32), 0, F), 1, F)

    def padb(b):
        return _pad_to(b.astype(jnp.float32).reshape(1, -1), 1, F)

    W = jnp.stack([jnp.stack([padw(p["w_in2f"]), padw(p["w1"]), padw(p["w2"]),
                              padw(p["w3"]), padw(p["w4"])], axis=0)
                   for p in interaction_params], axis=0)          # [L, 5, F, F]
    B = jnp.stack([jnp.concatenate([padb(p["b1"]), padb(p["b2"]), padb(p["b3"]),
                                    padb(p["b4"]),
                                    jnp.zeros((4, F), jnp.float32)], axis=0)
                   for p in interaction_params], axis=0)          # [L, 8, F]

    grid = (n_layers, n_tiles)
    in_specs = [
        pl.BlockSpec((tp, 8), lambda l, t: (t, 0)),                # packed pairs
        pl.BlockSpec((1, tp), lambda l, t: (0, t)),                # idx_i row
        pl.BlockSpec((2, F), lambda l, t: (0, 0)),                 # coeff/offsets
        pl.BlockSpec((a_p, F), lambda l, t: (0, 0)),               # x0 (read once)
        pl.BlockSpec((None, 5, F, F), lambda l, t: (l, 0, 0, 0)),  # stacked W
        pl.BlockSpec((None, 8, F), lambda l, t: (l, 0, 0)),        # stacked b
    ]
    # Resident atom state: constant index map => VMEM-resident, HBM write at end.
    out_specs = pl.BlockSpec((a_p, F), lambda l, t: (0, 0))
    scratch_shapes = [
        pltpu.VMEM((a_p, F), jnp.float32),   # per-layer x_f = x @ in2f
        pltpu.VMEM((a_p, F), jnp.float32),   # scatter-add accumulator
    ]

    # Chip-aware VMEM limit: ~3/4 of physical (96 MiB on v5e/v6e, 48 MiB on v7x).
    try:
        cap = getattr(pltpu.get_tpu_info(), "vmem_capacity_bytes", None)
        vmem_limit = int(cap * 3 // 4) if cap else 48 * 1024 * 1024
    except Exception:
        vmem_limit = 48 * 1024 * 1024

    out = pl.pallas_call(
        functools.partial(_cfconv_kernel, cutoff=float(cutoff), n_atoms_pad=a_p),
        out_shape=jax.ShapeDtypeStruct((a_p, F), jnp.float32),
        grid_spec=pltpu.PrefetchScalarGridSpec(
            num_scalar_prefetch=0,
            grid=grid,
            in_specs=in_specs,
            out_specs=out_specs,
            scratch_shapes=scratch_shapes),
        compiler_params=pltpu.CompilerParams(
            dimension_semantics=("arbitrary", "arbitrary"),
            vmem_limit_bytes=vmem_limit),
    )(pairs, idxi_row, geo, x0, W, B)

    return out[:n_atoms, :fa]


# --------------------------------------------------------------------------
# Pure-JAX reference, mirrors the PyTorch forward.
# --------------------------------------------------------------------------
def cfconv_reference(R, Z, idx_i, idx_j, emb_table, offsets, widths, cutoff,
                     interaction_params):
    Rij = R[idx_j] - R[idx_i]
    d_ij = jnp.linalg.norm(Rij, axis=1)
    coeff = -0.5 / (widths ** 2)
    diff = d_ij[:, None] - offsets[None, :]
    f_ij = jnp.exp(coeff[None, :] * diff ** 2)
    rcut = 0.5 * (jnp.cos(d_ij * math.pi / cutoff) + 1.0)
    rcut = rcut * (d_ij < cutoff).astype(jnp.float32)

    x = emb_table[Z]
    n_atoms = x.shape[0]
    for p in interaction_params:
        x_f = x @ p["w_in2f"]
        wij = _ssp(f_ij @ p["w1"] + p["b1"]) @ p["w2"] + p["b2"]
        wij = wij * rcut[:, None]
        x_ij = x_f[idx_j] * wij
        agg = jnp.zeros((n_atoms, x_f.shape[1]), jnp.float32).at[idx_i].add(x_ij)
        x = x + (_ssp(agg @ p["w3"] + p["b3"]) @ p["w4"] + p["b4"])
    return x


if __name__ == "__main__":
    # Small, module-consistent sizes.
    n_atoms = 8
    n_pairs = 16
    n_atom_feature = 32
    n_filters = 32          # n_filters defaults to n_atom_feature
    n_distance_feature = 16
    n_interactions = 2
    cutoff = 5.0
    start = 0.0

    key = jax.random.PRNGKey(0)
    keys = jax.random.split(key, 32)

    # Inputs
    R = jax.random.normal(keys[0], (n_atoms, 3), jnp.float32) * 2.0
    Z = jax.random.randint(keys[1], (n_atoms,), 1, 100)
    idx_i = jnp.arange(n_pairs, dtype=jnp.int32) % n_atoms
    idx_j = (jnp.arange(n_pairs, dtype=jnp.int32) * 3 + 1) % n_atoms

    # Buffers (as in __init__)
    offsets = jnp.linspace(start, cutoff, n_distance_feature, dtype=jnp.float32)
    widths = jnp.abs(offsets[1] - offsets[0]) * jnp.ones_like(offsets)

    # Deterministic parameter init (synthetic weights, not a checkpoint).
    emb_table = jax.random.normal(keys[2], (400, n_atom_feature), jnp.float32) * 0.5

    interaction_params = []
    k = 3
    for _ in range(n_interactions):
        p = {
            # Pre-transposed so the kernel computes x @ W (PyTorch Linear is x @ W.T).
            "w_in2f": jax.random.normal(keys[k + 0], (n_atom_feature, n_filters)) * 0.1,
            "w1": jax.random.normal(keys[k + 1], (n_distance_feature, n_filters)) * 0.1,
            "b1": jax.random.normal(keys[k + 2], (1, n_filters)) * 0.1,
            "w2": jax.random.normal(keys[k + 3], (n_filters, n_filters)) * 0.1,
            "b2": jax.random.normal(keys[k + 4], (1, n_filters)) * 0.1,
            "w3": jax.random.normal(keys[k + 5], (n_filters, n_atom_feature)) * 0.1,
            "b3": jax.random.normal(keys[k + 6], (1, n_atom_feature)) * 0.1,
            "w4": jax.random.normal(keys[k + 7], (n_atom_feature, n_atom_feature)) * 0.1,
            "b4": jax.random.normal(keys[k + 8], (1, n_atom_feature)) * 0.1,
        }
        p = {n: v.astype(jnp.float32) for n, v in p.items()}
        interaction_params.append(p)
        k += 9

    out = cfconv_forward(R, Z, idx_i, idx_j, emb_table, offsets, widths,
                         cutoff, interaction_params)
    out = jax.block_until_ready(out)

    ref = cfconv_reference(R, Z, idx_i, idx_j, emb_table, offsets, widths,
                           cutoff, interaction_params)
    assert out.shape == (n_atoms, n_atom_feature)
    err = float(jnp.max(jnp.abs(out - ref)))
    assert jnp.allclose(out, ref, rtol=1e-2, atol=1e-2), err

    print("KERNEL_OK")
</pallas_src>

<mosaic_0001>
module attributes {stable_mosaic.version = 11 : i64} {
  func.func @_cfconv_kernel(%arg0: i32, %arg1: i32, %arg2: memref<16x8xf32, #tpu.memory_space<vmem>>, %arg3: memref<1x16xf32, #tpu.memory_space<vmem>>, %arg4: memref<2x128xf32, #tpu.memory_space<vmem>>, %arg5: memref<128x128xf32, #tpu.memory_space<vmem>>, %arg6: memref<1x5x128x128xf32, #tpu.memory_space<vmem>>, %arg7: memref<1x8x128xf32, #tpu.memory_space<vmem>>, %arg8: memref<128x128xf32, #tpu.memory_space<vmem>>, %arg9: memref<128x128xf32, #tpu.memory_space<vmem>>, %arg10: memref<128x128xf32, #tpu.memory_space<vmem>>) attributes {dimension_semantics = [#tpu.dimension_semantics<arbitrary>, #tpu.dimension_semantics<arbitrary>], iteration_bounds = array<i64: 2, 1>, scalar_prefetch = 0 : i64, scratch_operands = 2 : i64, tpu.core_type = #tpu.core_type<tc>, window_params = [{transform_indices = @transform_0, window_bounds = array<i64: 16, 8>}, {transform_indices = @transform_1, window_bounds = array<i64: 1, 16>}, {pipeline_mode = #tpu.pipeline_mode<synchronous>, transform_indices = @transform_2, window_bounds = array<i64: 2, 128>}, {pipeline_mode = #tpu.pipeline_mode<synchronous>, transform_indices = @transform_3, window_bounds = array<i64: 128, 128>}, {transform_indices = @transform_4, window_bounds = array<i64: 1, 5, 128, 128>}, {transform_indices = @transform_5, window_bounds = array<i64: 1, 8, 128>}, {pipeline_mode = #tpu.pipeline_mode<synchronous>, transform_indices = @transform_6, window_bounds = array<i64: 128, 128>}]} {
    %c0_i32 = arith.constant 0 : i32
    %0 = arith.cmpi eq, %arg0, %c0_i32 : i32
    %c0_i32_0 = arith.constant 0 : i32
    %1 = arith.cmpi eq, %arg1, %c0_i32_0 : i32
    %2 = arith.andi %0, %1 : i1
    %3 = arith.extui %2 : i1 to i32
    %c0_i32_1 = arith.constant 0 : i32
    %4 = arith.cmpi ne, %3, %c0_i32_1 : i32
    scf.if %4 {
      %c0_41 = arith.constant 0 : index
      %c0_42 = arith.constant 0 : index
      %87 = vector.load %arg5[%c0_41, %c0_42] : memref<128x128xf32, #tpu.memory_space<vmem>>, vector<128x128xf32>
      %c0_43 = arith.constant 0 : index
      %c0_44 = arith.constant 0 : index
      %88 = vector.load %arg8[%c0_43, %c0_44] : memref<128x128xf32, #tpu.memory_space<vmem>>, vector<128x128xf32>
      tpu.vector_store %arg8[%c0_43, %c0_44], %87 {strides = array<i32>} : memref<128x128xf32, #tpu.memory_space<vmem>>, vector<128x128xf32>,
    } else {
    }
    %c0_i32_2 = arith.constant 0 : i32
    %5 = arith.cmpi eq, %arg1, %c0_i32_2 : i32
    %6 = arith.extui %5 : i1 to i32
    %c0_i32_3 = arith.constant 0 : i32
    %7 = arith.cmpi ne, %6, %c0_i32_3 : i32
    scf.if %7 {
      %c0_41 = arith.constant 0 : index
      %c0_42 = arith.constant 0 : index
      %87 = vector.load %arg8[%c0_41, %c0_42] : memref<128x128xf32, #tpu.memory_space<vmem>>, vector<128x128xf32>
      %c0_43 = arith.constant 0 : index
      %c0_44 = arith.constant 0 : index
      %c0_45 = arith.constant 0 : index
      %c0_46 = arith.constant 0 : index
      %88 = vector.load %arg6[%c0_43, %c0_44, %c0_45, %c0_46] : memref<1x5x128x128xf32, #tpu.memory_space<vmem>>, vector<1x1x128x128xf32>
      %89 = vector.shape_cast %88 : vector<1x1x128x128xf32> to vector<128x128xf32>
      %cst_47 = arith.constant dense<0.000000e+00> : vector<128x128xf32>
      %90 = tpu.matmul %87, %89, %cst_47 {dimension_numbers = #tpu.dot_dimension_numbers<[1], [0], [0], [1], [0, 0, 1, 1], [], []>} : vector<128x128xf32>, vector<128x128xf32>, vector<128x128xf32> -> vector<128x128xf32>
      %c0_48 = arith.constant 0 : index
      %c0_49 = arith.constant 0 : index
      %91 = vector.load %arg9[%c0_48, %c0_49] : memref<128x128xf32, #tpu.memory_space<vmem>>, vector<128x128xf32>
      tpu.vector_store %arg9[%c0_48, %c0_49], %90 {strides = array<i32>} : memref<128x128xf32, #tpu.memory_space<vmem>>, vector<128x128xf32>,
      %cst_50 = arith.constant 0.000000e+00 : f32
      %92 = vector.broadcast %cst_50 : f32 to vector<128x128xf32>
      %c0_51 = arith.constant 0 : index
      %c0_52 = arith.constant 0 : index
      %93 = vector.load %arg10[%c0_51, %c0_52] : memref<128x128xf32, #tpu.memory_space<vmem>>, vector<128x128xf32>
      tpu.vector_store %arg10[%c0_51, %c0_52], %92 {strides = array<i32>} : memref<128x128xf32, #tpu.memory_space<vmem>>, vector<128x128xf32>,
    } else {
    }
    %c0 = arith.constant 0 : index
    %c0_4 = arith.constant 0 : index
    %8 = vector.load %arg2[%c0, %c0_4] : memref<16x8xf32, #tpu.memory_space<vmem>>, vector<16x8xf32>
    %9 = vector.extract_strided_slice %8 {offsets = [0, 0], sizes = [16, 1], strides = [1, 1]} : vector<16x8xf32> to vector<16x1xf32>
    %10 = vector.extract_strided_slice %8 {offsets = [0, 1], sizes = [16, 1], strides = [1, 1]} : vector<16x8xf32> to vector<16x1xf32>
    %11 = arith.fptosi %10 : vector<16x1xf32> to vector<16x1xi32>
    %c0_5 = arith.constant 0 : index
    %c0_6 = arith.constant 0 : index
    %12 = vector.load %arg4[%c0_5, %c0_6] : memref<2x128xf32, #tpu.memory_space<vmem>>, vector<1x128xf32>
    %c1 = arith.constant 1 : index
    %c0_7 = arith.constant 0 : index
    %13 = vector.load %arg4[%c1, %c0_7] : memref<2x128xf32, #tpu.memory_space<vmem>>, vector<1x128xf32>
    %14 = vector.broadcast %9 : vector<16x1xf32> to vector<16x128xf32>
    %15 = vector.broadcast %13 : vector<1x128xf32> to vector<16x128xf32>
    %16 = arith.subf %14, %15 : vector<16x128xf32>
    %17 = vector.broadcast %12 : vector<1x128xf32> to vector<16x128xf32>
    %18 = arith.mulf %17, %16 : vector<16x128xf32>
    %19 = arith.mulf %18, %16 : vector<16x128xf32>
    %20 = math.exp %19 : vector<16x128xf32>
    %cst = arith.constant 0.628318548 : f32
    %21 = vector.broadcast %cst : f32 to vector<16x1xf32>
    %22 = arith.mulf %9, %21 : vector<16x1xf32>
    %23 = math.cos %22 : vector<16x1xf32>
    %cst_8 = arith.constant 1.000000e+00 : f32
    %24 = vector.broadcast %cst_8 : f32 to vector<16x1xf32>
    %25 = arith.addf %23, %24 : vector<16x1xf32>
    %cst_9 = arith.constant 5.000000e-01 : f32
    %26 = vector.broadcast %cst_9 : f32 to vector<16x1xf32>
    %27 = arith.mulf %26, %25 : vector<16x1xf32>
    %cst_10 = arith.constant 5.000000e+00 : f32
    %28 = vector.broadcast %cst_10 : f32 to vector<16x1xf32>
    %29 = arith.cmpf olt, %9, %28 : vector<16x1xf32>
    %30 = arith.extui %29 : vector<16x1xi1> to vector<16x1xi32>
    %31 = arith.sitofp %30 : vector<16x1xi32> to vector<16x1xf32>
    %32 = arith.mulf %27, %31 : vector<16x1xf32>
    %c0_11 = arith.constant 0 : index
    %c1_12 = arith.constant 1 : index
    %c0_13 = arith.constant 0 : index
    %c0_14 = arith.constant 0 : index
    %33 = vector.load %arg6[%c0_11, %c1_12, %c0_13, %c0_14] : memref<1x5x128x128xf32, #tpu.memory_space<vmem>>, vector<1x1x128x128xf32>
    %34 = vector.shape_cast %33 : vector<1x1x128x128xf32> to vector<128x128xf32>
    %cst_15 = arith.constant dense<0.000000e+00> : vector<16x128xf32>
    %35 = tpu.matmul %20, %34, %cst_15 {dimension_numbers = #tpu.dot_dimension_numbers<[1], [0], [0], [1], [0, 0, 1, 1], [], []>} : vector<16x128xf32>, vector<128x128xf32>, vector<16x128xf32> -> vector<16x128xf32>
    %c0_16 = arith.constant 0 : index
    %c0_17 = arith.constant 0 : index
    %c0_18 = arith.constant 0 : index
    %36 = vector.load %arg7[%c0_16, %c0_17, %c0_18] : memref<1x8x128xf32, #tpu.memory_space<vmem>>, vector<1x1x128xf32>
    %37 = vector.shape_cast %36 : vector<1x1x128xf32> to vector<1x128xf32>
    %38 = vector.broadcast %37 : vector<1x128xf32> to vector<16x128xf32>
    %39 = arith.addf %35, %38 : vector<16x128xf32>
    %cst_19 = arith.constant 0.000000e+00 : f32
    %40 = vector.broadcast %cst_19 : f32 to vector<16x128xf32>
    %41 = arith.maximumf %39, %40 : vector<16x128xf32>
    %42 = vector.broadcast %cst_19 : f32 to vector<16x128xf32>
    %43 = arith.subf %39, %42 : vector<16x128xf32>
    %44 = arith.cmpf one, %43, %43 : vector<16x128xf32>
    %45 = vector.broadcast %cst_19 : f32 to vector<16x128xf32>
    %46 = arith.addf %39, %45 : vector<16x128xf32>
    %47 = math.absf %43 : vector<16x128xf32>
    %cst_20 = arith.constant 0.000000e+00 : f32
    %48 = vector.broadcast %cst_20 : f32 to vector<16x128xf32>
    %49 = arith.subf %48, %47 : vector<16x128xf32>
    %50 = math.exp %49 : vector<16x128xf32>
    %51 = math.log1p %50 : vector<16x128xf32>
    %52 = arith.addf %41, %51 : vector<16x128xf32>
    %53 = arith.select %44, %46, %52 : vector<16x128xi1>, vector<16x128xf32>
    %cst_21 = arith.constant 0.693147182 : f32
    %54 = vector.broadcast %cst_21 : f32 to vector<16x128xf32>
    %55 = arith.subf %53, %54 : vector<16x128xf32>
    %c0_22 = arith.constant 0 : index
    %c2 = arith.constant 2 : index
    %c0_23 = arith.constant 0 : index
    %c0_24 = arith.constant 0 : index
    %56 = vector.load %arg6[%c0_22, %c2, %c0_23, %c0_24] : memref<1x5x128x128xf32, #tpu.memory_space<vmem>>, vector<1x1x128x128xf32>
    %57 = vector.shape_cast %56 : vector<1x1x128x128xf32> to vector<128x128xf32>
    %cst_25 = arith.constant dense<0.000000e+00> : vector<16x128xf32>
    %58 = tpu.matmul %55, %57, %cst_25 {dimension_numbers = #tpu.dot_dimension_numbers<[1], [0], [0], [1], [0, 0, 1, 1], [], []>} : vector<16x128xf32>, vector<128x128xf32>, vector<16x128xf32> -> vector<16x128xf32>
    %c0_26 = arith.constant 0 : index
    %c1_27 = arith.constant 1 : index
    %c0_28 = arith.constant 0 : index
    %59 = vector.load %arg7[%c0_26, %c1_27, %c0_28] : memref<1x8x128xf32, #tpu.memory_space<vmem>>, vector<1x1x128xf32>
    %60 = vector.shape_cast %59 : vector<1x1x128xf32> to vector<1x128xf32>
    %61 = vector.broadcast %60 : vector<1x128xf32> to vector<16x128xf32>
    %62 = arith.addf %58, %61 : vector<16x128xf32>
    %63 = vector.broadcast %32 : vector<16x1xf32> to vector<16x128xf32>
    %64 = arith.mulf %62, %63 : vector<16x128xf32>
    %65 = tpu.iota {dimensions = array<i32: 1>} : vector<16x128xi32>
    %66 = vector.broadcast %11 : vector<16x1xi32> to vector<16x128xi32>
    %67 = arith.cmpi eq, %66, %65 : vector<16x128xi32>
    %68 = arith.extui %67 : vector<16x128xi1> to vector<16x128xi32>
    %69 = arith.sitofp %68 : vector<16x128xi32> to vector<16x128xf32>
    %c0_29 = arith.constant 0 : index
    %c0_30 = arith.constant 0 : index
    %70 = vector.load %arg9[%c0_29, %c0_30] : memref<128x128xf32, #tpu.memory_space<vmem>>, vector<128x128xf32>
    %cst_31 = arith.constant dense<0.000000e+00> : vector<16x128xf32>
    %71 = tpu.matmul %69, %70, %cst_31 {dimension_numbers = #tpu.dot_dimension_numbers<[1], [0], [0], [1], [0, 0, 1, 1], [], []>} : vector<16x128xf32>, vector<128x128xf32>, vector<16x128xf32> -> vector<16x128xf32>
    %72 = arith.mulf %71, %64 : vector<16x128xf32>
    %c0_32 = arith.constant 0 : index
    %c0_33 = arith.constant 0 : index
    %73 = vector.load %arg3[%c0_32, %c0_33] : memref<1x16xf32, #tpu.memory_space<vmem>>, vector<1x16xf32>
    %74 = arith.fptosi %73 : vector<1x16xf32> to vector<1x16xi32>
    %75 = tpu.iota {dimensions = array<i32: 0>} : vector<128x16xi32>
    %76 = vector.broadcast %74 : vector<1x16xi32> to vector<128x16xi32>
    %77 = arith.cmpi eq, %76, %75 : vector<128x16xi32>
    %78 = arith.extui %77 : vector<128x16xi1> to vector<128x16xi32>
    %79 = arith.sitofp %78 : vector<128x16xi32> to vector<128x16xf32>
    %c0_34 = arith.constant 0 : index
    %c0_35 = arith.constant 0 : index
    %80 = vector.load %arg10[%c0_34, %c0_35] : memref<128x128xf32, #tpu.memory_space<vmem>>, vector<128x128xf32>
    %cst_36 = arith.constant dense<0.000000e+00> : vector<128x128xf32>
    %81 = tpu.matmul %79, %72, %cst_36 {dimension_numbers = #tpu.dot_dimension_numbers<[1], [0], [0], [1], [0, 0, 1, 1], [], []>} : vector<128x16xf32>, vector<16x128xf32>, vector<128x128xf32> -> vector<128x128xf32>
    %82 = arith.addf %80, %81 : vector<128x128xf32>
    %c0_37 = arith.constant 0 : index
    %c0_38 = arith.constant 0 : index
    %83 = vector.load %arg10[%c0_37, %c0_38] : memref<128x128xf32, #tpu.memory_space<vmem>>, vector<128x128xf32>
    tpu.vector_store %arg10[%c0_37, %c0_38], %82 {strides = array<i32>} : memref<128x128xf32, #tpu.memory_space<vmem>>, vector<128x128xf32>,
    %c0_i32_39 = arith.constant 0 : i32
    %84 = arith.cmpi eq, %arg1, %c0_i32_39 : i32
    %85 = arith.extui %84 : i1 to i32
    %c0_i32_40 = arith.constant 0 : i32
    %86 = arith.cmpi ne, %85, %c0_i32_40 : i32
    scf.if %86 {
      %c0_41 = arith.constant 0 : index
      %c0_42 = arith.constant 0 : index
      %87 = vector.load %arg10[%c0_41, %c0_42] : memref<128x128xf32, #tpu.memory_space<vmem>>, vector<128x128xf32>
      %c0_43 = arith.constant 0 : index
      %c3 = arith.constant 3 : index
      %c0_44 = arith.constant 0 : index
      %c0_45 = arith.constant 0 : index
      %88 = vector.load %arg6[%c0_43, %c3, %c0_44, %c0_45] : memref<1x5x128x128xf32, #tpu.memory_space<vmem>>, vector<1x1x128x128xf32>
      %89 = vector.shape_cast %88 : vector<1x1x128x128xf32> to vector<128x128xf32>
      %cst_46 = arith.constant dense<0.000000e+00> : vector<128x128xf32>
      %90 = tpu.matmul %87, %89, %cst_46 {dimension_numbers = #tpu.dot_dimension_numbers<[1], [0], [0], [1], [0, 0, 1, 1], [], []>} : vector<128x128xf32>, vector<128x128xf32>, vector<128x128xf32> -> vector<128x128xf32>
      %c0_47 = arith.constant 0 : index
      %c2_48 = arith.constant 2 : index
      %c0_49 = arith.constant 0 : index
      %91 = vector.load %arg7[%c0_47, %c2_48, %c0_49] : memref<1x8x128xf32, #tpu.memory_space<vmem>>, vector<1x1x128xf32>
      %92 = vector.shape_cast %91 : vector<1x1x128xf32> to vector<1x128xf32>
      %93 = vector.broadcast %92 : vector<1x128xf32> to vector<128x128xf32>
      %94 = arith.addf %90, %93 : vector<128x128xf32>
      %cst_50 = arith.constant 0.000000e+00 : f32
      %95 = vector.broadcast %cst_50 : f32 to vector<128x128xf32>
      %96 = arith.maximumf %94, %95 : vector<128x128xf32>
      %97 = vector.broadcast %cst_50 : f32 to vector<128x128xf32>
      %98 = arith.subf %94, %97 : vector<128x128xf32>
      %99 = arith.cmpf one, %98, %98 : vector<128x128xf32>
      %100 = vector.broadcast %cst_50 : f32 to vector<128x128xf32>
      %101 = arith.addf %94, %100 : vector<128x128xf32>
      %102 = math.absf %98 : vector<128x128xf32>
      %cst_51 = arith.constant 0.000000e+00 : f32
      %103 = vector.broadcast %cst_51 : f32 to vector<128x128xf32>
      %104 = arith.subf %103, %102 : vector<128x128xf32>
      %105 = math.exp %104 : vector<128x128xf32>
      %106 = math.log1p %105 : vector<128x128xf32>
      %107 = arith.addf %96, %106 : vector<128x128xf32>
      %108 = arith.select %99, %101, %107 : vector<128x128xi1>, vector<128x128xf32>
      %cst_52 = arith.constant 0.693147182 : f32
      %109 = vector.broadcast %cst_52 : f32 to vector<128x128xf32>
      %110 = arith.subf %108, %109 : vector<128x128xf32>
      %c0_53 = arith.constant 0 : index
      %c0_54 = arith.constant 0 : index
      %111 = vector.load %arg8[%c0_53, %c0_54] : memref<128x128xf32, #tpu.memory_space<vmem>>, vector<128x128xf32>
      %c0_55 = arith.constant 0 : index
      %c4 = arith.constant 4 : index
      %c0_56 = arith.constant 0 : index
      %c0_57 = arith.constant 0 : index
      %112 = vector.load %arg6[%c0_55, %c4, %c0_56, %c0_57] : memref<1x5x128x128xf32, #tpu.memory_space<vmem>>, vector<1x1x128x128xf32>
      %113 = vector.shape_cast %112 : vector<1x1x128x128xf32> to vector<128x128xf32>
      %cst_58 = arith.constant dense<0.000000e+00> : vector<128x128xf32>
      %114 = tpu.matmul %110, %113, %cst_58 {dimension_numbers = #tpu.dot_dimension_numbers<[1], [0], [0], [1], [0, 0, 1, 1], [], []>} : vector<128x128xf32>, vector<128x128xf32>, vector<128x128xf32> -> vector<128x128xf32>
      %115 = arith.addf %111, %114 : vector<128x128xf32>
      %c0_59 = arith.constant 0 : index
      %c3_60 = arith.constant 3 : index
      %c0_61 = arith.constant 0 : index
      %116 = vector.load %arg7[%c0_59, %c3_60, %c0_61] : memref<1x8x128xf32, #tpu.memory_space<vmem>>, vector<1x1x128xf32>
      %117 = vector.shape_cast %116 : vector<1x1x128xf32> to vector<1x128xf32>
      %118 = vector.broadcast %117 : vector<1x128xf32> to vector<128x128xf32>
      %119 = arith.addf %115, %118 : vector<128x128xf32>
      %c0_62 = arith.constant 0 : index
      %c0_63 = arith.constant 0 : index
      %120 = vector.load %arg8[%c0_62, %c0_63] : memref<128x128xf32, #tpu.memory_space<vmem>>, vector<128x128xf32>
      tpu.vector_store %arg8[%c0_62, %c0_63], %119 {strides = array<i32>} : memref<128x128xf32, #tpu.memory_space<vmem>>, vector<128x128xf32>,
    } else {
    }
    return
  }
  func.func @transform_0(%arg0: i32, %arg1: i32) -> (i32, i32) {
    %c0_i32 = arith.constant 0 : i32
    %c0_i32_0 = arith.constant 0 : i32
    return %arg1, %c0_i32 : i32, i32
  }
  func.func @transform_1(%arg0: i32, %arg1: i32) -> (i32, i32) {
    %c0_i32 = arith.constant 0 : i32
    %c0_i32_0 = arith.constant 0 : i32
    return %c0_i32, %arg1 : i32, i32
  }
  func.func @transform_2(%arg0: i32, %arg1: i32) -> (i32, i32) {
    %c0_i32 = arith.constant 0 : i32
    %c0_i32_0 = arith.constant 0 : i32
    %c0_i32_1 = arith.constant 0 : i32
    return %c0_i32, %c0_i32_0 : i32, i32
  }
  func.func @transform_3(%arg0: i32, %arg1: i32) -> (i32, i32) {
    %c0_i32 = arith.constant 0 : i32
    %c0_i32_0 = arith.constant 0 : i32
    %c0_i32_1 = arith.constant 0 : i32
    return %c0_i32, %c0_i32_0 : i32, i32
  }
  func.func @transform_4(%arg0: i32, %arg1: i32) -> (i32, i32, i32, i32) {
    %c0_i32 = arith.constant 0 : i32
    %c0_i32_0 = arith.constant 0 : i32
    %c0_i32_1 = arith.constant 0 : i32
    %c0_i32_2 = arith.constant 0 : i32
    return %arg0, %c0_i32, %c0_i32_0, %c0_i32_1 : i32, i32, i32, i32
  }
  func.func @transform_5(%arg0: i32, %arg1: i32) -> (i32, i32, i32) {
    %c0_i32 = arith.constant 0 : i32
    %c0_i32_0 = arith.constant 0 : i32
    %c0_i32_1 = arith.constant 0 : i32
    return %arg0, %c0_i32, %c0_i32_0 : i32, i32, i32
  }
  func.func @transform_6(%arg0: i32, %arg1: i32) -> (i32, i32) {
    %c0_i32 = arith.constant 0 : i32
    %c0_i32_0 = arith.constant 0 : i32
    %c0_i32_1 = arith.constant 0 : i32
    return %c0_i32, %c0_i32_0 : i32, i32
  }
}

</mosaic_0001>

<llo_original>
// kernel: tpu_custom_call.1
$region0: #{tpu_custom_call.1}
  #allocation0 [shape = 'u32[]', space=smem, size = 0x4, offset = 0x4, fixed_abs, tag = 'smem constant byte address 0x4 - core index']
  #allocation1 [shape = 'u32[72,128]{1,0:T(1,128)}', space=vmem, size = 0x9000, scoped, tag = 'internal scratch']
  #allocation2 [shape = 'f32[128,128]{1,0:T(8,128)}', space=vmem, size = 0x10000, scoped, tag = 'scratch operand']
  #allocation3 [shape = 'f32[128,128]{1,0:T(8,128)}', space=vmem, size = 0x10000, scoped, tag = 'scratch operand']
  %s0 = inlined_call_operand.vmem [shape: f32[16,8], index: 0, kind: input, shape index: {}]
  %s1 = inlined_call_operand.vmem [shape: f32[1,16], index: 1, kind: input, shape index: {}]
  %s2 = inlined_call_operand.vmem [shape: f32[2,128], index: 2, kind: input, shape index: {}]
  %s3 = inlined_call_operand.hbm [shape: f32[128,128], index: 3, kind: input, shape index: {}]
  %s4 = inlined_call_operand.hbm [shape: f32[2,5,128,128], index: 4, kind: input, shape index: {}]
  %s5 = inlined_call_operand.vmem [shape: f32[2,8,128], index: 5, kind: input, shape index: {}]
  %s6 = inlined_call_operand.hbm [shape: f32[128,128], index: 6, kind: output, shape index: {}]
  %s7 = sld [smem:[#allocation0]]
  $region77: #{tpu_custom_call.1} parent=0
    _
  %s9 = ssub.s32 1, %s7
  %s10 = scalar_select 0, %s9, %s7
  $region1: #{tpu_custom_call.1} parent=0
    #allocation4 [shape = 'u8[65536]{0}', space=vmem, size = 0x10000, scoped, tag = 'input window, operand 3, single buffered']
    #allocation5 [shape = 's32[2]{0}', space=sflag, size = 0x8, scoped, tag = 'scoped memory for tpu_custom_call.1']
    #allocation6 [shape = 's32[2]{0}', space=sflag, size = 0x8, scoped, tag = 'scoped memory for tpu_custom_call.1']
    #allocation7 [shape = 'u8[655360]{0}', space=vmem, size = 0xa0000, scoped, tag = 'input window, operand 4']
    #allocation8 [shape = 's32[2]{0}', space=sflag, size = 0x8, scoped, tag = 'scoped memory for tpu_custom_call.1']
    #allocation9 [shape = 'u8[65536]{0}', space=vmem, size = 0x10000, scoped, tag = 'output window, operand 0, single buffered']
    %11 = vsyncpa [#allocation5], 0
    %12 = vsyncpa [#allocation8], 0
    %s13 = scalar_lea.sflag [#allocation8], 1
    %14 = vsyncpa %s13, 0
    %15 = vsyncpa [#allocation6], 0
    loop: start=0, step=1, limit=4
    $region2: #{tpu_custom_call.1} parent=1 // loop_pre_header
      _
    $region3: #{tpu_custom_call.1} parent=1 // loop_header
      %s17 = sphi 0, %s21
      %p18 = scmp.ge.s32.totalorder %s17, 4
      %s24 = sphi 0, %s36
      %s25 = sphi 0, %s32
      %s26 = sphi 0, %s24
      %s27 = sphi 0, %s25
      %s28 = sphi 0, %s26
      %s29 = sphi 0, %s27
      %s39 = sphi 0, %s41
      %s42 = sphi 0, %s39
      %s43 = sphi 0, %s42
      %s59 = sphi 0, %s43
      %s65 = sphi 0, %s67
      %s68 = sphi 0, %s65
      %s69 = sphi 0, %s68
      %s85 = sphi 0, %s69
      %s89 = sphi 0, %s89
      %s91 = sphi 0, %s89
      %s92 = sphi 0, %s91
      %s106 = sphi 0, %s92
      %s110 = sphi 0, %s110
      %s112 = sphi 0, %s110
      %s113 = sphi 0, %s112
      %s127 = sphi 0, %s113
      %s133 = sphi 0, %s135
      %s136 = sphi 0, %s133
      %s137 = sphi 0, %s136
      %s153 = sphi 0, %s137
      %s159 = sphi 0, %s161
      %s162 = sphi 0, %s159
      %s163 = sphi 0, %s162
      %s179 = sphi 0, %s163
      %s183 = sphi 0, %s183
      %s185 = sphi 0, %s183
      %s186 = sphi 0, %s185
      %s200 = sphi 0, %s186
    $region4: #{tpu_custom_call.1} parent=1 // loop_header_branch
      %20 = sbr.rel (%p18) target = $region8
    $region5: #{tpu_custom_call.1} parent=1 // loop_body
      %s22 = ssub.s32 %s17, 1
      %s23 = ssub.s32 %s17, 2
      %s30 = sadd.s32 1, %s25
      %p31 = scmp.ge.s32.totalorder %s30, 1
      %s32 = scalar_select %p31, 0, %s30
      %s33 = sadd.s32 1, %s24
      %s34 = scalar_select %p31, %s33, %s24
      %p35 = scmp.ge.s32.totalorder %s34, 2
      %s36 = scalar_select %p35, 0, %s34
      %s37 = ssub.s32 %s25, %s32
      %p38 = scmp.eq.s32.totalorder %s37, 0
      %s40 = sadd.s32 %s39, 1
      %s41 = scalar_select %p38, %s39, %s40
      %p44 = pneg %p38
      %p45 = scmp.eq.s32.totalorder %s17, 1
      %p46 = por %p44, %p45
      %p47 = scmp.ne.s32.totalorder %s39, %s42
      %p48 = scmp.eq.s32.totalorder %s17, 0
      %p49 = por %p47, %p48
      %p50 = scmp.ne.s32.totalorder %s39, %s42
      %p51 = scmp.eq.s32.totalorder %s22, 1
      %p52 = por %p50, %p51
      %p53 = scmp.ne.s32.totalorder %s42, %s43
      %p54 = scmp.eq.s32.totalorder %s22, 0
      %p55 = por %p53, %p54
      %p56 = scmp.ne.s32.totalorder %s42, %s43
      %p57 = scmp.eq.s32.totalorder %s23, 1
      %p58 = por %p56, %p57
      %p60 = scmp.ne.s32.totalorder %s43, %s59
      %p61 = scmp.eq.s32.totalorder %s23, 0
      %p62 = por %p60, %p61
      %s63 = ssub.s32 %s25, %s32
      %p64 = scmp.eq.s32.totalorder %s63, 0
      %s66 = sadd.s32 %s65, 1
      %s67 = scalar_select %p64, %s65, %s66
      %p70 = pneg %p64
      %p71 = scmp.eq.s32.totalorder %s17, 1
      %p72 = por %p70, %p71
      %p73 = scmp.ne.s32.totalorder %s65, %s68
      %p74 = scmp.eq.s32.totalorder %s17, 0
      %p75 = por %p73, %p74
      %p76 = scmp.ne.s32.totalorder %s65, %s68
      %p77 = scmp.eq.s32.totalorder %s22, 1
      %p78 = por %p76, %p77
      %p79 = scmp.ne.s32.totalorder %s68, %s69
      %p80 = scmp.eq.s32.totalorder %s22, 0
      %p81 = por %p79, %p80
      %p82 = scmp.ne.s32.totalorder %s68, %s69
      %p83 = scmp.eq.s32.totalorder %s23, 1
      %p84 = por %p82, %p83
      %p86 = scmp.ne.s32.totalorder %s69, %s85
      %p87 = scmp.eq.s32.totalorder %s23, 0
      %p88 = por %p86, %p87
      %s90 = sadd.s32 %s89, 1
      %p93 = scmp.eq.s32.totalorder %s17, 1
      %p94 = scmp.ne.s32.totalorder %s89, %s91
      %p95 = scmp.eq.s32.totalorder %s17, 0
      %p96 = por %p94, %p95
      %p97 = scmp.ne.s32.totalorder %s89, %s91
      %p98 = scmp.eq.s32.totalorder %s22, 1
      %p99 = por %p97, %p98
      %p100 = scmp.ne.s32.totalorder %s91, %s92
      %p101 = scmp.eq.s32.totalorder %s22, 0
      %p102 = por %p100, %p101
      %p103 = scmp.ne.s32.totalorder %s91, %s92
      %p104 = scmp.eq.s32.totalorder %s23, 1
      %p105 = por %p103, %p104
      %p107 = scmp.ne.s32.totalorder %s92, %s106
      %p108 = scmp.eq.s32.totalorder %s23, 0
      %p109 = por %p107, %p108
      %s111 = sadd.s32 %s110, 1
      %p114 = scmp.eq.s32.totalorder %s17, 1
      %p115 = scmp.ne.s32.totalorder %s110, %s112
      %p116 = scmp.eq.s32.totalorder %s17, 0
      %p117 = por %p115, %p116
      %p118 = scmp.ne.s32.totalorder %s110, %s112
      %p119 = scmp.eq.s32.totalorder %s22, 1
      %p120 = por %p118, %p119
      %p121 = scmp.ne.s32.totalorder %s112, %s113
      %p122 = scmp.eq.s32.totalorder %s22, 0
      %p123 = por %p121, %p122
      %p124 = scmp.ne.s32.totalorder %s112, %s113
      %p125 = scmp.eq.s32.totalorder %s23, 1
      %p126 = por %p124, %p125
      %p128 = scmp.ne.s32.totalorder %s113, %s127
      %p129 = scmp.eq.s32.totalorder %s23, 0
      %p130 = por %p128, %p129
      %s131 = ssub.s32 %s24, %s36
      %p132 = scmp.eq.s32.totalorder %s131, 0
      %s134 = sadd.s32 %s133, 1
      %s135 = scalar_select %p132, %s133, %s134
      %p138 = pneg %p132
      %p139 = scmp.eq.s32.totalorder %s17, 1
      %p140 = por %p138, %p139
      %p141 = scmp.ne.s32.totalorder %s133, %s136
      %p142 = scmp.eq.s32.totalorder %s17, 0
      %p143 = por %p141, %p142
      %p144 = scmp.ne.s32.totalorder %s133, %s136
      %p145 = scmp.eq.s32.totalorder %s22, 1
      %p146 = por %p144, %p145
      %p147 = scmp.ne.s32.totalorder %s136, %s137
      %p148 = scmp.eq.s32.totalorder %s22, 0
      %p149 = por %p147, %p148
      %p150 = scmp.ne.s32.totalorder %s136, %s137
      %p151 = scmp.eq.s32.totalorder %s23, 1
      %p152 = por %p150, %p151
      %p154 = scmp.ne.s32.totalorder %s137, %s153
      %p155 = scmp.eq.s32.totalorder %s23, 0
      %p156 = por %p154, %p155
      %s157 = ssub.s32 %s24, %s36
      %p158 = scmp.eq.s32.totalorder %s157, 0
      %s160 = sadd.s32 %s159, 1
      %s161 = scalar_select %p158, %s159, %s160
      %p164 = pneg %p158
      %p165 = scmp.eq.s32.totalorder %s17, 1
      %p166 = por %p164, %p165
      %p167 = scmp.ne.s32.totalorder %s159, %s162
      %p168 = scmp.eq.s32.totalorder %s17, 0
      %p169 = por %p167, %p168
      %p170 = scmp.ne.s32.totalorder %s159, %s162
      %p171 = scmp.eq.s32.totalorder %s22, 1
      %p172 = por %p170, %p171
      %p173 = scmp.ne.s32.totalorder %s162, %s163
      %p174 = scmp.eq.s32.totalorder %s22, 0
      %p175 = por %p173, %p174
      %p176 = scmp.ne.s32.totalorder %s162, %s163
      %p177 = scmp.eq.s32.totalorder %s23, 1
      %p178 = por %p176, %p177
      %p180 = scmp.ne.s32.totalorder %s163, %s179
      %p181 = scmp.eq.s32.totalorder %s23, 0
      %p182 = por %p180, %p181
      %s184 = sadd.s32 %s183, 1
      %p187 = scmp.eq.s32.totalorder %s17, 1
      %p188 = scmp.ne.s32.totalorder %s183, %s185
      %p189 = scmp.eq.s32.totalorder %s17, 0
      %p190 = por %p188, %p189
      %p191 = scmp.ne.s32.totalorder %s183, %s185
      %p192 = scmp.eq.s32.totalorder %s22, 1
      %p193 = por %p191, %p192
      %p194 = scmp.ne.s32.totalorder %s185, %s186
      %p195 = scmp.eq.s32.totalorder %s22, 0
      %p196 = por %p194, %p195
      %p197 = scmp.ne.s32.totalorder %s185, %s186
      %p198 = scmp.eq.s32.totalorder %s23, 1
      %p199 = por %p197, %p198
      %p201 = scmp.ne.s32.totalorder %s186, %s200
      %p202 = scmp.eq.s32.totalorder %s23, 0
      %p203 = por %p201, %p202
      %p204 = scmp.le.s32.totalorder 1, %s17
      %p205 = scmp.lt.s32.totalorder %s17, 3
      %p206 = pnand %p204, %p205
      %p207 = pneg %p206
      // Predicated region
      $region9: #{tpu_custom_call.1} parent=5 // pred_check
        _
      $region10: #{tpu_custom_call.1} parent=5 // pred_check_branch
        %209 = sbr.rel (%p206) target = $region12
      $region11: #{tpu_custom_call.1} parent=5 // pred_region
        %s210 = ssub.s32 %s17, 1
        // Predicated region
        $region13: #{tpu_custom_call.1} parent=11 // pred_check
          %p211 = pneg %p55
        $region14: #{tpu_custom_call.1} parent=11 // pred_check_branch
          %213 = sbr.rel (%p211) target = $region16
        $region15: #{tpu_custom_call.1} parent=11 // pred_region
          %s214 = smul.u32 2, %s27
          %p215 = scmp.lt.s32.totalorder %s214, 1
          %s216 = scalar_select %p215, %s214, 1
          %s217 = smul.addr %s216, 8
          %s218 = scalar_lea.vmem %s0, %s217
          %s219 = smul.u32 2, %s27
        $region16: #{tpu_custom_call.1} parent=11 // pred_fallthru
          _
        // Predicated region
        $region17: #{tpu_custom_call.1} parent=11 // pred_check
          %p220 = pneg %p81
        $region18: #{tpu_custom_call.1} parent=11 // pred_check_branch
          %222 = sbr.rel (%p220) target = $region20
        $region19: #{tpu_custom_call.1} parent=11 // pred_region
          %p223 = scmp.lt.s32.totalorder %s27, 0
          %s224 = scalar_select %p223, %s27, 0
          %s225 = scalar_lea.vmem %s1, %s224
        $region20: #{tpu_custom_call.1} parent=11 // pred_fallthru
          _
        // Predicated region
        $region21: #{tpu_custom_call.1} parent=11 // pred_check
          %p226 = pneg %p102
        $region22: #{tpu_custom_call.1} parent=11 // pred_check_branch
          %228 = sbr.rel (%p226) target = $region24
        $region23: #{tpu_custom_call.1} parent=11 // pred_region
          _
        $region24: #{tpu_custom_call.1} parent=11 // pred_fallthru
          _
        // Predicated region
        $region25: #{tpu_custom_call.1} parent=11 // pred_check
          %p229 = pneg %p123
        $region26: #{tpu_custom_call.1} parent=11 // pred_check_branch
          %231 = sbr.rel (%p229) target = $region28
        $region27: #{tpu_custom_call.1} parent=11 // pred_region
          %233 = vsyncadd [#allocation5], 0
          %s234 = sshll.u32 %s3, 4
          %s235 = int_to_ptr.hbm [resolvable:$true] %s234
          %s236 = sshll.u32 [#allocation4], 4
          %s237 = int_to_ptr.vmem [resolvable:$true] %s236
          %242 = dma.hbm_to_vmem [thread:$0]  %s235, 2048, %s237, [#allocation5], 128, 128, 8
        $region28: #{tpu_custom_call.1} parent=11 // pred_fallthru
          _
      $region12: #{tpu_custom_call.1} parent=5 // pred_fallthru
        _
      %p243 = scmp.lt.s32.totalorder %s17, 2
      // Predicated region
      $region29: #{tpu_custom_call.1} parent=5 // pred_check
        %p244 = pneg %p243
      $region30: #{tpu_custom_call.1} parent=5 // pred_check_branch
        %246 = sbr.rel (%p244) target = $region32
      $region31: #{tpu_custom_call.1} parent=5 // pred_region
        // Predicated region
        $region33: #{tpu_custom_call.1} parent=31 // pred_check
          %p247 = pneg %p143
        $region34: #{tpu_custom_call.1} parent=31 // pred_check_branch
          %249 = sbr.rel (%p247) target = $region36
        $region35: #{tpu_custom_call.1} parent=31 // pred_region
          %s250 = sand.u32 %s133, 1
          %s251 = scalar_lea.sflag [#allocation8], %s250
          %s252 = sand.u32 %s133, 1
          %s253 = smul.addr %s252, 640
          %s254 = scalar_lea.vmem [#allocation7], %s253
          %256 = vsyncadd %s251, 0
          %s257 = smul.addr %s24, 80
          %s258 = smul.addr %s257, 8
          %s259 = scalar_lea.hbm %s4, %s258
          %s260 = sshll.u32 %s259, 4
          %s261 = int_to_ptr.hbm [resolvable:$true] %s260
          %s262 = sshll.u32 %s254, 4
          %s263 = int_to_ptr.vmem [resolvable:$true] %s262
          %268 = dma.hbm_to_vmem [thread:$0]  %s261, 10240, %s263, %s251, 128, 128, 8
        $region36: #{tpu_custom_call.1} parent=31 // pred_fallthru
          _
        // Predicated region
        $region37: #{tpu_custom_call.1} parent=31 // pred_check
          %p269 = pneg %p169
        $region38: #{tpu_custom_call.1} parent=31 // pred_check_branch
          %271 = sbr.rel (%p269) target = $region40
        $region39: #{tpu_custom_call.1} parent=31 // pred_region
          %p272 = scmp.lt.s32.totalorder %s24, 1
          %s273 = scalar_select %p272, %s24, 1
          %s274 = smul.addr %s273, 8
          %s275 = scalar_lea.vmem %s5, %s274
        $region40: #{tpu_custom_call.1} parent=31 // pred_fallthru
          _
      $region32: #{tpu_custom_call.1} parent=5 // pred_fallthru
        _
      %p276 = scmp.le.s32.totalorder 1, %s17
      %p277 = scmp.lt.s32.totalorder %s17, 3
      %p278 = pnand %p276, %p277
      %p279 = pneg %p278
      // Predicated region
      $region41: #{tpu_custom_call.1} parent=5 // pred_check
        _
      $region42: #{tpu_custom_call.1} parent=5 // pred_check_branch
        %281 = sbr.rel (%p278) target = $region44
      $region43: #{tpu_custom_call.1} parent=5 // pred_region
        %s282 = ssub.s32 %s17, 1
        // Predicated region
        $region45: #{tpu_custom_call.1} parent=43 // pred_check
          %p283 = pneg %p123
        $region46: #{tpu_custom_call.1} parent=43 // pred_check_branch
          %285 = sbr.rel (%p283) target = $region48
        $region47: #{tpu_custom_call.1} parent=43 // pred_region
          %287 = dma.done [#allocation5], 2048
        $region48: #{tpu_custom_call.1} parent=43 // pred_fallthru
          _
        %s288 = sand.u32 %s136, 1
        %s289 = scalar_lea.sflag [#allocation8], %s288
        %s290 = sand.u32 %s136, 1
        %s291 = smul.addr %s290, 640
        %s292 = scalar_lea.vmem [#allocation7], %s291
        // Predicated region
        $region49: #{tpu_custom_call.1} parent=43 // pred_check
          %p293 = pneg %p149
        $region50: #{tpu_custom_call.1} parent=43 // pred_check_branch
          %295 = sbr.rel (%p293) target = $region52
        $region51: #{tpu_custom_call.1} parent=43 // pred_region
          %297 = dma.done %s289, 10240
        $region52: #{tpu_custom_call.1} parent=43 // pred_fallthru
          _
        %s298 = smul.u32 2, %s27
        %p299 = scmp.lt.s32.totalorder %s298, 1
        %s300 = scalar_select %p299, %s298, 1
        %s301 = smul.addr %s300, 8
        %s302 = scalar_lea.vmem %s0, %s301
        %p303 = pneg %p55
        %p304 = pneg %p52
        %p305 = scmp.lt.s32.totalorder %s27, 0
        %s306 = scalar_select %p305, %s27, 0
        %s307 = scalar_lea.vmem %s1, %s306
        %p308 = pneg %p81
        %p309 = pneg %p78
        %p310 = pneg %p102
        %p311 = pneg %p99
        %p312 = pneg %p123
        %p313 = pneg %p120
        %s314 = sand.u32 %s136, 1
        %s315 = scalar_lea.sflag [#allocation8], %s314
        %s316 = sand.u32 %s136, 1
        %s317 = smul.addr %s316, 640
        %s318 = scalar_lea.vmem [#allocation7], %s317
        %p319 = pneg %p149
        %p320 = pneg %p146
        %p321 = scmp.lt.s32.totalorder %s26, 1
        %s322 = scalar_select %p321, %s26, 1
        %s323 = smul.addr %s322, 8
        %s324 = scalar_lea.vmem %s5, %s323
        %p325 = pneg %p175
        %p326 = pneg %p172
        %p327 = pneg %p196
        %p328 = pneg %p193
        %s329 = smul.u32 2, %s27
        %p330 = scmp.lt.s32.totalorder %s329, 1
        %s331 = scalar_select %p330, %s329, 1
        %s332 = smul.addr %s331, 8
        %s333 = scalar_lea.vmem %s0, %s332
        %s334 = smul.u32 2, %s27
        %p335 = scmp.lt.s32.totalorder %s27, 0
        %s336 = scalar_select %p335, %s27, 0
        %s337 = scalar_lea.vmem %s1, %s336
        %p338 = scmp.lt.s32.totalorder %s26, 1
        %s339 = scalar_select %p338, %s26, 1
        %s340 = smul.addr %s339, 8
        %s341 = scalar_lea.vmem %s5, %s340
        %p342 = scmp.eq.s32.totalorder %s26, 0
        %p343 = scmp.eq.s32.totalorder %s27, 0
        %p344 = pnand %p342, %p343
        %p345 = pneg %p344
        // Predicated region
        $region53: #{tpu_custom_call.1} parent=43 // pred_check
          _
        $region54: #{tpu_custom_call.1} parent=43 // pred_check_branch
          %347 = sbr.rel (%p344) target = $region56
        $region55: #{tpu_custom_call.1} parent=43 // pred_region
          %v348 = vld [vmem:[#allocation4] sm:$0xff]
          %v349 = vld [vmem:[#allocation4 + $0x8] sm:$0xff]
          %v350 = vld [vmem:[#allocation4 + $0x10] sm:$0xff]
          %v351 = vld [vmem:[#allocation4 + $0x18] sm:$0xff]
          %v352 = vld [vmem:[#allocation4 + $0x20] sm:$0xff]
          %v353 = vld [vmem:[#allocation4 + $0x28] sm:$0xff]
          %v354 = vld [vmem:[#allocation4 + $0x30] sm:$0xff]
          %v355 = vld [vmem:[#allocation4 + $0x38] sm:$0xff]
          %v356 = vld [vmem:[#allocation4 + $0x40] sm:$0xff]
          %v357 = vld [vmem:[#allocation4 + $0x48] sm:$0xff]
          %v358 = vld [vmem:[#allocation4 + $0x50] sm:$0xff]
          %v359 = vld [vmem:[#allocation4 + $0x58] sm:$0xff]
          %v360 = vld [vmem:[#allocation4 + $0x60] sm:$0xff]
          %v361 = vld [vmem:[#allocation4 + $0x68] sm:$0xff]
          %v362 = vld [vmem:[#allocation4 + $0x70] sm:$0xff]
          %v363 = vld [vmem:[#allocation4 + $0x78] sm:$0xff]
          %364 = vst [vmem:[#allocation9] sm:$0xff] %v348
          %365 = vst [vmem:[#allocation9 + $0x8] sm:$0xff] %v349
          %366 = vst [vmem:[#allocation9 + $0x10] sm:$0xff] %v350
          %367 = vst [vmem:[#allocation9 + $0x18] sm:$0xff] %v351
          %368 = vst [vmem:[#allocation9 + $0x20] sm:$0xff] %v352
          %369 = vst [vmem:[#allocation9 + $0x28] sm:$0xff] %v353
          %370 = vst [vmem:[#allocation9 + $0x30] sm:$0xff] %v354
          %371 = vst [vmem:[#allocation9 + $0x38] sm:$0xff] %v355
          %372 = vst [vmem:[#allocation9 + $0x40] sm:$0xff] %v356
          %373 = vst [vmem:[#allocation9 + $0x48] sm:$0xff] %v357
          %374 = vst [vmem:[#allocation9 + $0x50] sm:$0xff] %v358
          %375 = vst [vmem:[#allocation9 + $0x58] sm:$0xff] %v359
          %376 = vst [vmem:[#allocation9 + $0x60] sm:$0xff] %v360
          %377 = vst [vmem:[#allocation9 + $0x68] sm:$0xff] %v361
          %378 = vst [vmem:[#allocation9 + $0x70] sm:$0xff] %v362
          %379 = vst [vmem:[#allocation9 + $0x78] sm:$0xff] %v363
        $region56: #{tpu_custom_call.1} parent=43 // pred_fallthru
          _
        // Predicated region
        $region57: #{tpu_custom_call.1} parent=43 // pred_check
          %p380 = pneg %p343
        $region58: #{tpu_custom_call.1} parent=43 // pred_check_branch
          %382 = sbr.rel (%p380) target = $region60
        $region59: #{tpu_custom_call.1} parent=43 // pred_region
          %v383 = vld [vmem:[#allocation9] sm:$0xff]
          %v384 = vld [vmem:[#allocation9 + $0x8] sm:$0xff]
          %v385 = vld [vmem:[#allocation9 + $0x10] sm:$0xff]
          %v386 = vld [vmem:[#allocation9 + $0x18] sm:$0xff]
          %v387 = vld [vmem:[#allocation9 + $0x20] sm:$0xff]
          %v388 = vld [vmem:[#allocation9 + $0x28] sm:$0xff]
          %v389 = vld [vmem:[#allocation9 + $0x30] sm:$0xff]
          %v390 = vld [vmem:[#allocation9 + $0x38] sm:$0xff]
          %v391 = vld [vmem:[#allocation9 + $0x40] sm:$0xff]
          %v392 = vld [vmem:[#allocation9 + $0x48] sm:$0xff]
          %v393 = vld [vmem:[#allocation9 + $0x50] sm:$0xff]
          %v394 = vld [vmem:[#allocation9 + $0x58] sm:$0xff]
          %v395 = vld [vmem:[#allocation9 + $0x60] sm:$0xff]
          %v396 = vld [vmem:[#allocation9 + $0x68] sm:$0xff]
          %v397 = vld [vmem:[#allocation9 + $0x70] sm:$0xff]
          %v398 = vld [vmem:[#allocation9 + $0x78] sm:$0xff]
          %v399 = vld [vmem:[%s292] sm:$0xff]
          %v400 = vld [vmem:[%s292 + $0x8] sm:$0xff]
          %v401 = vld [vmem:[%s292 + $0x10] sm:$0xff]
          %v402 = vld [vmem:[%s292 + $0x18] sm:$0xff]
          %v403 = vld [vmem:[%s292 + $0x20] sm:$0xff]
          %v404 = vld [vmem:[%s292 + $0x28] sm:$0xff]
          %v405 = vld [vmem:[%s292 + $0x30] sm:$0xff]
          %v406 = vld [vmem:[%s292 + $0x38] sm:$0xff]
          %v407 = vld [vmem:[%s292 + $0x40] sm:$0xff]
          %v408 = vld [vmem:[%s292 + $0x48] sm:$0xff]
          %v409 = vld [vmem:[%s292 + $0x50] sm:$0xff]
          %v410 = vld [vmem:[%s292 + $0x58] sm:$0xff]
          %v411 = vld [vmem:[%s292 + $0x60] sm:$0xff]
          %v412 = vld [vmem:[%s292 + $0x68] sm:$0xff]
          %v413 = vld [vmem:[%s292 + $0x70] sm:$0xff]
          %v414 = vld [vmem:[%s292 + $0x78] sm:$0xff]
          %415 = vmatpush.msra.mxu0 %v414
          %416 = vmatpush.msra.mxu0 %v413
          %417 = vmatpush.msra.mxu0 %v412
          %418 = vmatpush.msra.mxu0 %v411
          %419 = vmatpush.msra.mxu0 %v410
          %420 = vmatpush.msra.mxu0 %v409
          %421 = vmatpush.msra.mxu0 %v408
          %422 = vmatpush.msra.mxu0 %v407
          %423 = vmatpush.msra.mxu0 %v406
          %424 = vmatpush.msra.mxu0 %v405
          %425 = vmatpush.msra.mxu0 %v404
          %426 = vmatpush.msra.mxu0 %v403
          %427 = vmatpush.msra.mxu0 %v402
          %428 = vmatpush.msra.mxu0 %v401
          %429 = vmatpush.msra.mxu0 %v400
          %430 = vmatpush.msra.mxu0 %v399
          %431 = vmatmul.f32.gmra.mxu0 %v383
          %v432 = vpop.f32.mrf.mxu0
          %v433 = vadd.f32 0.0, %v432
          %434 = vmatmul.f32.gmra.mxu0 %v384
          %v435 = vpop.f32.mrf.mxu0
          %v436 = vadd.f32 0.0, %v435
          %437 = vmatmul.f32.gmra.mxu0 %v385
          %v438 = vpop.f32.mrf.mxu0
          %v439 = vadd.f32 0.0, %v438
          %440 = vmatmul.f32.gmra.mxu0 %v386
          %v441 = vpop.f32.mrf.mxu0
          %v442 = vadd.f32 0.0, %v441
          %443 = vmatmul.f32.gmra.mxu0 %v387
          %v444 = vpop.f32.mrf.mxu0
          %v445 = vadd.f32 0.0, %v444
          %446 = vmatmul.f32.gmra.mxu0 %v388
          %v447 = vpop.f32.mrf.mxu0
          %v448 = vadd.f32 0.0, %v447
          %449 = vmatmul.f32.gmra.mxu0 %v389
          %v450 = vpop.f32.mrf.mxu0
          %v451 = vadd.f32 0.0, %v450
          %452 = vmatmul.f32.gmra.mxu0 %v390
          %v453 = vpop.f32.mrf.mxu0
          %v454 = vadd.f32 0.0, %v453
          %455 = vmatmul.f32.gmra.mxu0 %v391
          %v456 = vpop.f32.mrf.mxu0
          %v457 = vadd.f32 0.0, %v456
          %458 = vmatmul.f32.gmra.mxu0 %v392
          %v459 = vpop.f32.mrf.mxu0
          %v460 = vadd.f32 0.0, %v459
          %461 = vmatmul.f32.gmra.mxu0 %v393
          %v462 = vpop.f32.mrf.mxu0
          %v463 = vadd.f32 0.0, %v462
          %464 = vmatmul.f32.gmra.mxu0 %v394
          %v465 = vpop.f32.mrf.mxu0
          %v466 = vadd.f32 0.0, %v465
          %467 = vmatmul.f32.gmra.mxu0 %v395
          %v468 = vpop.f32.mrf.mxu0
          %v469 = vadd.f32 0.0, %v468
          %470 = vmatmul.f32.gmra.mxu0 %v396
          %v471 = vpop.f32.mrf.mxu0
          %v472 = vadd.f32 0.0, %v471
          %473 = vmatmul.f32.gmra.mxu0 %v397
          %v474 = vpop.f32.mrf.mxu0
          %v475 = vadd.f32 0.0, %v474
          %476 = vmatmul.f32.gmra.mxu0 %v398
          %v477 = vpop.f32.mrf.mxu0
          %v478 = vadd.f32 0.0, %v477
          %479 = vdwg.mxu0
          %480 = vst [vmem:[#allocation2] sm:$0xff] %v433
          %481 = vst [vmem:[#allocation2 + $0x8] sm:$0xff] %v436
          %482 = vst [vmem:[#allocation2 + $0x10] sm:$0xff] %v439
          %483 = vst [vmem:[#allocation2 + $0x18] sm:$0xff] %v442
          %484 = vst [vmem:[#allocation2 + $0x20] sm:$0xff] %v445
          %485 = vst [vmem:[#allocation2 + $0x28] sm:$0xff] %v448
          %486 = vst [vmem:[#allocation2 + $0x30] sm:$0xff] %v451
          %487 = vst [vmem:[#allocation2 + $0x38] sm:$0xff] %v454
          %488 = vst [vmem:[#allocation2 + $0x40] sm:$0xff] %v457
          %489 = vst [vmem:[#allocation2 + $0x48] sm:$0xff] %v460
          %490 = vst [vmem:[#allocation2 + $0x50] sm:$0xff] %v463
          %491 = vst [vmem:[#allocation2 + $0x58] sm:$0xff] %v466
          %492 = vst [vmem:[#allocation2 + $0x60] sm:$0xff] %v469
          %493 = vst [vmem:[#allocation2 + $0x68] sm:$0xff] %v472
          %494 = vst [vmem:[#allocation2 + $0x70] sm:$0xff] %v475
          %495 = vst [vmem:[#allocation2 + $0x78] sm:$0xff] %v478
          %496 = vst [vmem:[#allocation3] sm:$0xff] 0.0
          %497 = vst [vmem:[#allocation3 + $0x8] sm:$0xff] 0.0
          %498 = vst [vmem:[#allocation3 + $0x10] sm:$0xff] 0.0
          %499 = vst [vmem:[#allocation3 + $0x18] sm:$0xff] 0.0
          %500 = vst [vmem:[#allocation3 + $0x20] sm:$0xff] 0.0
          %501 = vst [vmem:[#allocation3 + $0x28] sm:$0xff] 0.0
          %502 = vst [vmem:[#allocation3 + $0x30] sm:$0xff] 0.0
          %503 = vst [vmem:[#allocation3 + $0x38] sm:$0xff] 0.0
          %504 = vst [vmem:[#allocation3 + $0x40] sm:$0xff] 0.0
          %505 = vst [vmem:[#allocation3 + $0x48] sm:$0xff] 0.0
          %506 = vst [vmem:[#allocation3 + $0x50] sm:$0xff] 0.0
          %507 = vst [vmem:[#allocation3 + $0x58] sm:$0xff] 0.0
          %508 = vst [vmem:[#allocation3 + $0x60] sm:$0xff] 0.0
          %509 = vst [vmem:[#allocation3 + $0x68] sm:$0xff] 0.0
          %510 = vst [vmem:[#allocation3 + $0x70] sm:$0xff] 0.0
          %511 = vst [vmem:[#allocation3 + $0x78] sm:$0xff] 0.0
        $region60: #{tpu_custom_call.1} parent=43 // pred_fallthru
          _
        %v512 = vld [vmem:[%s333] sm:$0xff]
        %v513 = vld [vmem:[%s333 + $0x8] sm:$0xff]
        %v514 = vcvt.f32.s32.to.zero.pseudo %v512
        %v515 = vcvt.f32.s32.to.zero.pseudo %v513
        %v516 = vld [vmem:[%s2] sm:$0x1]
        %v517 = vld [vmem:[%s2 + $0x1] sm:$0x1]
        %519 = vset.pattern.permute.xlu0 0
        %520 = vperm.xlu0 %519, %v512
        %v521 = vpop.permute.xlu0 %520
        %524 = vset.pattern.permute.xlu0 0
        %525 = vperm.xlu0 %524, %v513
        %v526 = vpop.permute.xlu0 %525
        %v528 = vperm.slane %v517, 0
        %v529 = vsub.f32 %v521, %v528
        %v530 = vsub.f32 %v526, %v528
        %v531 = vperm.slane %v516, 0
        %v532 = vmul.f32 %v531, %v529
        %v533 = vmul.f32 %v531, %v530
        %v534 = vmul.f32 %v532, %v529
        %v535 = vmul.f32 %v533, %v530
        %v536 = vmul.f32 %v534, 1.442695
        %v537 = vpow.pop %v536
        %v538 = vmul.f32 %v535, 1.442695
        %v539 = vpow.pop %v538
        %v540 = vmul.f32 %v512, 0.62831855
        %v541 = vmul.f32 %v513, 0.62831855
        %v542 = vand.u32 2147483647, %v540
        %vm543 = vcmp.le.f32.partialorder %v542, 0.7853982
        %vm544 = vcmp.lt.s32.totalorder %v540, 0
        %v545 = vand.u32 %v540, 2139095040
        %v546 = vshrl.u32 %v545, 23
        %v547 = vsub.s32 %v546, 127
        %v548 = vand.u32 2147483647, %v540
        %v549 = vand.u32 %v548, 8388607
        %v550 = vor.u32 %v549, 8388608
        %v551 = vsub.s32 0, %v550
        %v552 = vadd.s32 %v547, 1
        %vm553 = vcmp.gt.s32.totalorder %v552, 0
        %v554 = vsel %vm553, %v552, 0
        %v555 = vshrl.u32 %v554, 5
        %v556 = vand.u32 %v554, 31
        %v557 = vsub.s32 32, %v556
        %v558 = vshrl.u32 683565275, %v557
        %v559 = vshll.u32 683565275, %v556
        %v560 = vshrl.u32 2475754826, %v557
        %v561 = vor.u32 %v559, %v560
        %v562 = vshll.u32 2475754826, %v556
        %v563 = vshrl.u32 2131351028, %v557
        %v564 = vor.u32 %v562, %v563
        %v565 = vshll.u32 2131351028, %v556
        %v566 = vshrl.u32 2102212464, %v557
        %v567 = vor.u32 %v565, %v566
        %v568 = vshll.u32 2102212464, %v556
        %v569 = vshrl.u32 920167782, %v557
        %v570 = vor.u32 %v568, %v569
        %v571 = vshll.u32 920167782, %v556
        %v572 = vshrl.u32 1326507024, %v557
        %v573 = vor.u32 %v571, %v572
        %vm574 = vcmp.lt.s32.totalorder %v555, 1
        %vm575 = vcmp.lt.s32.totalorder %v555, 2
        %vm576 = vcmp.lt.s32.totalorder %v555, 3
        %vm577 = vcmp.lt.s32.totalorder %v555, 4
        %v578 = vsel %vm574, %v558, %v561
        %v579 = vsel %vm577, %v567, 2102212464
        %v580 = vsel %vm576, %v564, %v579
        %v581 = vsel %vm575, %v578, %v580
        %v582 = vsel %vm574, %v561, %v564
        %v583 = vsel %vm577, %v570, 920167782
        %v584 = vsel %vm576, %v567, %v583
        %v585 = vsel %vm575, %v582, %v584
        %v586 = vsel %vm574, %v564, %v567
        %v587 = vsel %vm577, %v573, 1326507024
        %v588 = vsel %vm576, %v570, %v587
        %v589 = vsel %vm575, %v586, %v588
        %v590 = vshll.u32 %v550, 8
        %v591 = vand.u32 %v590, 65535
        %v592 = vshrl.u32 %v590, 16
        %v593 = vand.u32 %v589, 65535
        %v594 = vshrl.u32 %v589, 16
        %v595 = vmul.u32 %v591, %v593
        %v596 = vmul.u32 %v591, %v594
        %v597 = vmul.u32 %v592, %v593
        %v598 = vmul.u32 %v592, %v594
        %v599 = vshll.u32 %v596, 16
        %v600 = vshrl.u32 %v596, 16
        %v601 = vshll.u32 %v597, 16
        %v602 = vshrl.u32 %v597, 16
        %vm603 = vc.u32 %v595, %v599
        %v604 = vsel %vm603, 1, 0
        %v605 = vadd.s32 %v595, %v599
        %v606 = vadd.s32 %v598, %v604
        %vm607 = vc.u32 %v605, %v601
        %v608 = vsel %vm607, 1, 0
        %v609 = vadd.s32 %v605, %v601
        %v610 = vadd.s32 %v606, %v608
        %v611 = vadd.s32 %v610, %v600
        %v612 = vadd.s32 %v611, %v602
        %v613 = vand.u32 %v590, 65535
        %v614 = vshrl.u32 %v590, 16
        %v615 = vand.u32 %v585, 65535
        %v616 = vshrl.u32 %v585, 16
        %v617 = vmul.u32 %v613, %v615
        %v618 = vmul.u32 %v613, %v616
        %v619 = vmul.u32 %v614, %v615
        %v620 = vmul.u32 %v614, %v616
        %v621 = vshll.u32 %v618, 16
        %v622 = vshrl.u32 %v618, 16
        %v623 = vshll.u32 %v619, 16
        %v624 = vshrl.u32 %v619, 16
        %vm625 = vc.u32 %v617, %v621
        %v626 = vsel %vm625, 1, 0
        %v627 = vadd.s32 %v617, %v621
        %v628 = vadd.s32 %v620, %v626
        %vm629 = vc.u32 %v627, %v623
        %v630 = vsel %vm629, 1, 0
        %v631 = vadd.s32 %v627, %v623
        %v632 = vadd.s32 %v628, %v630
        %v633 = vadd.s32 %v632, %v622
        %v634 = vadd.s32 %v633, %v624
        %v635 = vmul.u32 %v590, %v581
        %v636 = vadd.s32 %v612, %v631
        %vm637 = vc.u32 %v612, %v631
        %v638 = vadd.s32 %v634, 1
        %v639 = vsel %vm637, %v638, %v634
        %v640 = vadd.s32 %v635, %v639
        %v641 = vadd.s32 %v640, 536870912
        %v642 = vshrl.u32 %v641, 30
        %v643 = vshll.u32 %v642, 30
        %v644 = vsub.s32 %v640, %v643
        %vm645 = vcmp.lt.s32.totalorder %v644, 0
        %v646 = vsub.s32 0, %v644
        %v647 = vsel %vm645, %v646, %v644
        %v648 = vclz %v647
        %v649 = vsub.s32 %v648, 2
        %vm650 = vcmp.gt.s32.totalorder 0, %v649
        %v651 = vsel %vm650, 0, %v649
        %v652 = vsub.s32 32, %v651
        %v653 = vshll.u32 %v644, %v651
        %v654 = vshrl.u32 %v636, %v652
        %v655 = vor.u32 %v653, %v654
        %v656 = vsub.s32 4294967266, %v651
        %v657 = vadd.s32 %v656, 127
        %v658 = vshll.u32 %v657, 23
        %v659 = vor.u32 4788187, %v658
        %v660 = vand.u32 2147483647, %v659
        %v662 = vcvt.s32.f32 %v655
        %v663 = vmul.f32 %v662, %v660
        %v664 = vxor.u32 %v663, 2147483648
        %v665 = vsel %vm544, %v664, %v663
        %v666 = vsub.s32 4, %v642
        %v667 = vsel %vm544, %v666, %v642
        %v668 = vsel %vm543, %v540, %v665
        %v669 = vsel %vm543, 0, %v667
        %v670 = vmul.f32 %v668, %v668
        %v671 = vmul.f32 %v670, -0.001358992
        %v672 = vadd.f32 %v671, 0.041655596
        %v673 = vmul.f32 %v670, %v672
        %v674 = vadd.f32 %v673, -0.4999988
        %v675 = vmul.f32 %v670, %v674
        %v676 = vadd.f32 1.0, %v675
        %v677 = vmul.f32 %v668, %v668
        %v678 = vmul.f32 %v677, -0.00019511016
        %v679 = vadd.f32 %v678, 0.008332121
        %v680 = vmul.f32 %v677, %v679
        %v681 = vadd.f32 %v680, -0.16666654
        %v682 = vmul.f32 %v677, %v681
        %v683 = vadd.f32 %v682, 1.0
        %v684 = vmul.f32 %v683, %v668
        %vm685 = vweird.f32 %v540
        %v686 = vand.u32 %v669, 3
        %vm687 = vcmp.lt.s32.totalorder %v686, 2
        %vm688 = vcmp.eq.s32.totalorder %v686, 0
        %v689 = vxor.u32 %v684, 2147483648
        %v690 = vsel %vm688, %v676, %v689
        %vm691 = vcmp.eq.s32.totalorder %v686, 2
        %v692 = vxor.u32 %v676, 2147483648
        %v693 = vsel %vm691, %v692, %v684
        %v694 = vsel %vm687, %v690, %v693
        %v695 = vsel %vm685, nan, %v694
        %v696 = vand.u32 2147483647, %v541
        %vm697 = vcmp.le.f32.partialorder %v696, 0.7853982
        %vm698 = vcmp.lt.s32.totalorder %v541, 0
        %v699 = vand.u32 %v541, 2139095040
        %v700 = vshrl.u32 %v699, 23
        %v701 = vsub.s32 %v700, 127
        %v702 = vand.u32 2147483647, %v541
        %v703 = vand.u32 %v702, 8388607
        %v704 = vor.u32 %v703, 8388608
        %v705 = vsub.s32 0, %v704
        %v706 = vadd.s32 %v701, 1
        %vm707 = vcmp.gt.s32.totalorder %v706, 0
        %v708 = vsel %vm707, %v706, 0
        %v709 = vshrl.u32 %v708, 5
        %v710 = vand.u32 %v708, 31
        %v711 = vsub.s32 32, %v710
        %v712 = vshrl.u32 683565275, %v711
        %v713 = vshll.u32 683565275, %v710
        %v714 = vshrl.u32 2475754826, %v711
        %v715 = vor.u32 %v713, %v714
        %v716 = vshll.u32 2475754826, %v710
        %v717 = vshrl.u32 2131351028, %v711
        %v718 = vor.u32 %v716, %v717
        %v719 = vshll.u32 2131351028, %v710
        %v720 = vshrl.u32 2102212464, %v711
        %v721 = vor.u32 %v719, %v720
        %v722 = vshll.u32 2102212464, %v710
        %v723 = vshrl.u32 920167782, %v711
        %v724 = vor.u32 %v722, %v723
        %v725 = vshll.u32 920167782, %v710
        %v726 = vshrl.u32 1326507024, %v711
        %v727 = vor.u32 %v725, %v726
        %vm728 = vcmp.lt.s32.totalorder %v709, 1
        %vm729 = vcmp.lt.s32.totalorder %v709, 2
        %vm730 = vcmp.lt.s32.totalorder %v709, 3
        %vm731 = vcmp.lt.s32.totalorder %v709, 4
        %v732 = vsel %vm728, %v712, %v715
        %v733 = vsel %vm731, %v721, 2102212464
        %v734 = vsel %vm730, %v718, %v733
        %v735 = vsel %vm729, %v732, %v734
        %v736 = vsel %vm728, %v715, %v718
        %v737 = vsel %vm731, %v724, 920167782
        %v738 = vsel %vm730, %v721, %v737
        %v739 = vsel %vm729, %v736, %v738
        %v740 = vsel %vm728, %v718, %v721
        %v741 = vsel %vm731, %v727, 1326507024
        %v742 = vsel %vm730, %v724, %v741
        %v743 = vsel %vm729, %v740, %v742
        %v744 = vshll.u32 %v704, 8
        %v745 = vand.u32 %v744, 65535
        %v746 = vshrl.u32 %v744, 16
        %v747 = vand.u32 %v743, 65535
        %v748 = vshrl.u32 %v743, 16
        %v749 = vmul.u32 %v745, %v747
        %v750 = vmul.u32 %v745, %v748
        %v751 = vmul.u32 %v746, %v747
        %v752 = vmul.u32 %v746, %v748
        %v753 = vshll.u32 %v750, 16
        %v754 = vshrl.u32 %v750, 16
        %v755 = vshll.u32 %v751, 16
        %v756 = vshrl.u32 %v751, 16
        %vm757 = vc.u32 %v749, %v753
        %v758 = vsel %vm757, 1, 0
        %v759 = vadd.s32 %v749, %v753
        %v760 = vadd.s32 %v752, %v758
        %vm761 = vc.u32 %v759, %v755
        %v762 = vsel %vm761, 1, 0
        %v763 = vadd.s32 %v759, %v755
        %v764 = vadd.s32 %v760, %v762
        %v765 = vadd.s32 %v764, %v754
        %v766 = vadd.s32 %v765, %v756
        %v767 = vand.u32 %v744, 65535
        %v768 = vshrl.u32 %v744, 16
        %v769 = vand.u32 %v739, 65535
        %v770 = vshrl.u32 %v739, 16
        %v771 = vmul.u32 %v767, %v769
        %v772 = vmul.u32 %v767, %v770
        %v773 = vmul.u32 %v768, %v769
        %v774 = vmul.u32 %v768, %v770
        %v775 = vshll.u32 %v772, 16
        %v776 = vshrl.u32 %v772, 16
        %v777 = vshll.u32 %v773, 16
        %v778 = vshrl.u32 %v773, 16
        %vm779 = vc.u32 %v771, %v775
        %v780 = vsel %vm779, 1, 0
        %v781 = vadd.s32 %v771, %v775
        %v782 = vadd.s32 %v774, %v780
        %vm783 = vc.u32 %v781, %v777
        %v784 = vsel %vm783, 1, 0
        %v785 = vadd.s32 %v781, %v777
        %v786 = vadd.s32 %v782, %v784
        %v787 = vadd.s32 %v786, %v776
        %v788 = vadd.s32 %v787, %v778
        %v789 = vmul.u32 %v744, %v735
        %v790 = vadd.s32 %v766, %v785
        %vm791 = vc.u32 %v766, %v785
        %v792 = vadd.s32 %v788, 1
        %v793 = vsel %vm791, %v792, %v788
        %v794 = vadd.s32 %v789, %v793
        %v795 = vadd.s32 %v794, 536870912
        %v796 = vshrl.u32 %v795, 30
        %v797 = vshll.u32 %v796, 30
        %v798 = vsub.s32 %v794, %v797
        %vm799 = vcmp.lt.s32.totalorder %v798, 0
        %v800 = vsub.s32 0, %v798
        %v801 = vsel %vm799, %v800, %v798
        %v802 = vclz %v801
        %v803 = vsub.s32 %v802, 2
        %vm804 = vcmp.gt.s32.totalorder 0, %v803
        %v805 = vsel %vm804, 0, %v803
        %v806 = vsub.s32 32, %v805
        %v807 = vshll.u32 %v798, %v805
        %v808 = vshrl.u32 %v790, %v806
        %v809 = vor.u32 %v807, %v808
        %v810 = vsub.s32 4294967266, %v805
        %v811 = vadd.s32 %v810, 127
        %v812 = vshll.u32 %v811, 23
        %v813 = vor.u32 4788187, %v812
        %v814 = vand.u32 2147483647, %v813
        %v816 = vcvt.s32.f32 %v809
        %v817 = vmul.f32 %v816, %v814
        %v818 = vxor.u32 %v817, 2147483648
        %v819 = vsel %vm698, %v818, %v817
        %v820 = vsub.s32 4, %v796
        %v821 = vsel %vm698, %v820, %v796
        %v822 = vsel %vm697, %v541, %v819
        %v823 = vsel %vm697, 0, %v821
        %v824 = vmul.f32 %v822, %v822
        %v825 = vmul.f32 %v824, -0.001358992
        %v826 = vadd.f32 %v825, 0.041655596
        %v827 = vmul.f32 %v824, %v826
        %v828 = vadd.f32 %v827, -0.4999988
        %v829 = vmul.f32 %v824, %v828
        %v830 = vadd.f32 1.0, %v829
        %v831 = vmul.f32 %v822, %v822
        %v832 = vmul.f32 %v831, -0.00019511016
        %v833 = vadd.f32 %v832, 0.008332121
        %v834 = vmul.f32 %v831, %v833
        %v835 = vadd.f32 %v834, -0.16666654
        %v836 = vmul.f32 %v831, %v835
        %v837 = vadd.f32 %v836, 1.0
        %v838 = vmul.f32 %v837, %v822
        %vm839 = vweird.f32 %v541
        %v840 = vand.u32 %v823, 3
        %vm841 = vcmp.lt.s32.totalorder %v840, 2
        %vm842 = vcmp.eq.s32.totalorder %v840, 0
        %v843 = vxor.u32 %v838, 2147483648
        %v844 = vsel %vm842, %v830, %v843
        %vm845 = vcmp.eq.s32.totalorder %v840, 2
        %v846 = vxor.u32 %v830, 2147483648
        %v847 = vsel %vm845, %v846, %v838
        %v848 = vsel %vm841, %v844, %v847
        %v849 = vsel %vm839, nan, %v848
        %v850 = vadd.f32 %v695, 1.0
        %v851 = vadd.f32 %v849, 1.0
        %v852 = vmul.f32 %v850, 0.5
        %v853 = vmul.f32 %v851, 0.5
        %vm854 = vcmp.lt.f32.partialorder %v512, 5.0
        %vm855 = vcmp.lt.f32.partialorder %v513, 5.0
        %v856 = vsel %vm854, 1, 0
        %v857 = vsel %vm855, 1, 0
        %v858 = vcvt.s32.f32 %v856
        %v859 = vcvt.s32.f32 %v857
        %v860 = vmul.f32 %v852, %v858
        %v861 = vmul.f32 %v853, %v859
        %s862 = scalar_lea.vmem %s292, 128 [#allocation7]
        %v863 = vld [vmem:[%s862] sm:$0xff]
        %v864 = vld [vmem:[%s862 + $0x8] sm:$0xff]
        %v865 = vld [vmem:[%s862 + $0x10] sm:$0xff]
        %v866 = vld [vmem:[%s862 + $0x18] sm:$0xff]
        %v867 = vld [vmem:[%s862 + $0x20] sm:$0xff]
        %v868 = vld [vmem:[%s862 + $0x28] sm:$0xff]
        %v869 = vld [vmem:[%s862 + $0x30] sm:$0xff]
        %v870 = vld [vmem:[%s862 + $0x38] sm:$0xff]
        %v871 = vld [vmem:[%s862 + $0x40] sm:$0xff]
        %v872 = vld [vmem:[%s862 + $0x48] sm:$0xff]
        %v873 = vld [vmem:[%s862 + $0x50] sm:$0xff]
        %v874 = vld [vmem:[%s862 + $0x58] sm:$0xff]
        %v875 = vld [vmem:[%s862 + $0x60] sm:$0xff]
        %v876 = vld [vmem:[%s862 + $0x68] sm:$0xff]
        %v877 = vld [vmem:[%s862 + $0x70] sm:$0xff]
        %v878 = vld [vmem:[%s862 + $0x78] sm:$0xff]
        %v879 = vld [vmem:[%s341] sm:$0x1]
        %v880 = vperm.slane %v879, 0
        %881 = vmatpush.msra.mxu0 %v878
        %882 = vmatpush.msra.mxu0 %v877
        %883 = vmatpush.msra.mxu0 %v876
        %884 = vmatpush.msra.mxu0 %v875
        %885 = vmatpush.msra.mxu0 %v874
        %886 = vmatpush.msra.mxu0 %v873
        %887 = vmatpush.msra.mxu0 %v872
        %888 = vmatpush.msra.mxu0 %v871
        %889 = vmatpush.msra.mxu0 %v870
        %890 = vmatpush.msra.mxu0 %v869
        %891 = vmatpush.msra.mxu0 %v868
        %892 = vmatpush.msra.mxu0 %v867
        %893 = vmatpush.msra.mxu0 %v866
        %894 = vmatpush.msra.mxu0 %v865
        %895 = vmatpush.msra.mxu0 %v864
        %896 = vmatpush.msra.mxu0 %v863
        %897 = vmatmul.f32.gmra.mxu0 %v537
        %v898 = vpop.f32.mrf.mxu0
        %v899 = vadd.f32 %v880, %v898
        %900 = vmatmul.f32.gmra.mxu0 %v539
        %v901 = vpop.f32.mrf.mxu0
        %v902 = vadd.f32 %v880, %v901
        %903 = vdwg.mxu0
        %v904 = vmax.f32 %v899, 0.0
        %v905 = vmax.f32 %v902, 0.0
        %vm906 = vcmp.ne.f32.partialorder %v899, %v899
        %vm907 = vcmp.ne.f32.partialorder %v902, %v902
        %v908 = vadd.f32 %v899, 0.0
        %v909 = vadd.f32 %v902, 0.0
        %v910 = vand.u32 2147483647, %v899
        %v911 = vand.u32 2147483647, %v902
        %v912 = vsub.f32 0.0, %v910
        %v913 = vsub.f32 0.0, %v911
        %v914 = vmul.f32 %v912, 1.442695
        %v915 = vpow.pop %v914
        %v916 = vmul.f32 %v913, 1.442695
        %v917 = vpow.pop %v916
        %v918 = vadd.f32 %v915, 1.0
        %v919 = vlog2.pop %v918
        %v920 = vmul.f32 %v919, 0.6931472
        %v921 = vmul.f32 -0.5, %v915
        %v922 = vadd.f32 %v921, 1.0
        %v923 = vmul.f32 %v922, %v915
        %v924 = vand.u32 2147483647, %v915
        %vm925 = vcmp.lt.f32.partialorder %v924, 0.0004427343
        %v926 = vsel %vm925, %v923, %v920
        %v927 = vadd.f32 %v917, 1.0
        %v928 = vlog2.pop %v927
        %v929 = vmul.f32 %v928, 0.6931472
        %v930 = vmul.f32 -0.5, %v917
        %v931 = vadd.f32 %v930, 1.0
        %v932 = vmul.f32 %v931, %v917
        %v933 = vand.u32 2147483647, %v917
        %vm934 = vcmp.lt.f32.partialorder %v933, 0.0004427343
        %v935 = vsel %vm934, %v932, %v929
        %v936 = vadd.f32 %v904, %v926
        %v937 = vadd.f32 %v905, %v935
        %v938 = vsel %vm906, %v908, %v936
        %v939 = vsel %vm907, %v909, %v937
        %v940 = vsub.f32 %v938, 0.6931472
        %v941 = vsub.f32 %v939, 0.6931472
        %s942 = scalar_lea.vmem %s292, 256 [#allocation7]
        %v943 = vld [vmem:[%s942] sm:$0xff]
        %v944 = vld [vmem:[%s942 + $0x8] sm:$0xff]
        %v945 = vld [vmem:[%s942 + $0x10] sm:$0xff]
        %v946 = vld [vmem:[%s942 + $0x18] sm:$0xff]
        %v947 = vld [vmem:[%s942 + $0x20] sm:$0xff]
        %v948 = vld [vmem:[%s942 + $0x28] sm:$0xff]
        %v949 = vld [vmem:[%s942 + $0x30] sm:$0xff]
        %v950 = vld [vmem:[%s942 + $0x38] sm:$0xff]
        %v951 = vld [vmem:[%s942 + $0x40] sm:$0xff]
        %v952 = vld [vmem:[%s942 + $0x48] sm:$0xff]
        %v953 = vld [vmem:[%s942 + $0x50] sm:$0xff]
        %v954 = vld [vmem:[%s942 + $0x58] sm:$0xff]
        %v955 = vld [vmem:[%s942 + $0x60] sm:$0xff]
        %v956 = vld [vmem:[%s942 + $0x68] sm:$0xff]
        %v957 = vld [vmem:[%s942 + $0x70] sm:$0xff]
        %v958 = vld [vmem:[%s942 + $0x78] sm:$0xff]
        %v959 = vld [vmem:[%s341 + $0x1] sm:$0x1]
        %v960 = vperm.slane %v959, 0
        %961 = vmatpush.msra.mxu0 %v958
        %962 = vmatpush.msra.mxu0 %v957
        %963 = vmatpush.msra.mxu0 %v956
        %964 = vmatpush.msra.mxu0 %v955
        %965 = vmatpush.msra.mxu0 %v954
        %966 = vmatpush.msra.mxu0 %v953
        %967 = vmatpush.msra.mxu0 %v952
        %968 = vmatpush.msra.mxu0 %v951
        %969 = vmatpush.msra.mxu0 %v950
        %970 = vmatpush.msra.mxu0 %v949
        %971 = vmatpush.msra.mxu0 %v948
        %972 = vmatpush.msra.mxu0 %v947
        %973 = vmatpush.msra.mxu0 %v946
        %974 = vmatpush.msra.mxu0 %v945
        %975 = vmatpush.msra.mxu0 %v944
        %976 = vmatpush.msra.mxu0 %v943
        %977 = vmatmul.f32.gmra.mxu0 %v940
        %v978 = vpop.f32.mrf.mxu0
        %v979 = vadd.f32 %v960, %v978
        %980 = vmatmul.f32.gmra.mxu0 %v941
        %v981 = vpop.f32.mrf.mxu0
        %v982 = vadd.f32 %v960, %v981
        %983 = vdwg.mxu0
        %985 = vset.pattern.permute.xlu0 0
        %986 = vperm.xlu0 %985, %v860
        %v987 = vpop.permute.xlu0 %986
        %990 = vset.pattern.permute.xlu0 0
        %991 = vperm.xlu0 %990, %v861
        %v992 = vpop.permute.xlu0 %991
        %v994 = vmul.f32 %v979, %v987
        %v995 = vmul.f32 %v982, %v992
        %v996 = vlaneseq
        %v997 = vand.u32 %v996, 127
        %998 = vset.pattern.permute.xlu0 1
        %999 = vperm.xlu0 %998, %v514
        %v1000 = vpop.permute.xlu0 %999
        %1001 = vset.pattern.permute.xlu0 1
        %1002 = vperm.xlu0 %1001, %v515
        %v1003 = vpop.permute.xlu0 %1002
        %vm1004 = vcmp.eq.s32.totalorder %v1000, %v997
        %vm1005 = vcmp.eq.s32.totalorder %v1003, %v997
        %v1006 = vsel %vm1004, 1, 0
        %v1007 = vsel %vm1005, 1, 0
        %v1008 = vcvt.s32.f32 %v1006
        %v1009 = vcvt.s32.f32 %v1007
        %v1010 = vld [vmem:[#allocation2] sm:$0xff]
        %v1011 = vld [vmem:[#allocation2 + $0x8] sm:$0xff]
        %v1012 = vld [vmem:[#allocation2 + $0x10] sm:$0xff]
        %v1013 = vld [vmem:[#allocation2 + $0x18] sm:$0xff]
        %v1014 = vld [vmem:[#allocation2 + $0x20] sm:$0xff]
        %v1015 = vld [vmem:[#allocation2 + $0x28] sm:$0xff]
        %v1016 = vld [vmem:[#allocation2 + $0x30] sm:$0xff]
        %v1017 = vld [vmem:[#allocation2 + $0x38] sm:$0xff]
        %v1018 = vld [vmem:[#allocation2 + $0x40] sm:$0xff]
        %v1019 = vld [vmem:[#allocation2 + $0x48] sm:$0xff]
        %v1020 = vld [vmem:[#allocation2 + $0x50] sm:$0xff]
        %v1021 = vld [vmem:[#allocation2 + $0x58] sm:$0xff]
        %v1022 = vld [vmem:[#allocation2 + $0x60] sm:$0xff]
        %v1023 = vld [vmem:[#allocation2 + $0x68] sm:$0xff]
        %v1024 = vld [vmem:[#allocation2 + $0x70] sm:$0xff]
        %v1025 = vld [vmem:[#allocation2 + $0x78] sm:$0xff]
        %1026 = vmatpush.msra.mxu0 %v1025
        %1027 = vmatpush.msra.mxu0 %v1024
        %1028 = vmatpush.msra.mxu0 %v1023
        %1029 = vmatpush.msra.mxu0 %v1022
        %1030 = vmatpush.msra.mxu0 %v1021
        %1031 = vmatpush.msra.mxu0 %v1020
        %1032 = vmatpush.msra.mxu0 %v1019
        %1033 = vmatpush.msra.mxu0 %v1018
        %1034 = vmatpush.msra.mxu0 %v1017
        %1035 = vmatpush.msra.mxu0 %v1016
        %1036 = vmatpush.msra.mxu0 %v1015
        %1037 = vmatpush.msra.mxu0 %v1014
        %1038 = vmatpush.msra.mxu0 %v1013
        %1039 = vmatpush.msra.mxu0 %v1012
        %1040 = vmatpush.msra.mxu0 %v1011
        %1041 = vmatpush.msra.mxu0 %v1010
        %1042 = vmatmul.f32.gmra.mxu0 %v1008
        %v1043 = vpop.f32.mrf.mxu0
        %v1044 = vadd.f32 0.0, %v1043
        %1045 = vmatmul.f32.gmra.mxu0 %v1009
        %v1046 = vpop.f32.mrf.mxu0
        %v1047 = vadd.f32 0.0, %v1046
        %1048 = vdwg.mxu0
        %v1049 = vmul.f32 %v1044, %v994
        %v1050 = vmul.f32 %v1047, %v995
        %v1051 = vld [vmem:[%s337] sm:$0x1]
        %v1052 = vcvt.f32.s32.to.zero.pseudo %v1051
        %v1053 = vlaneseq
        %v1054 = vshrl.u32 %v1053, 7
        %v1055 = vadd.s32 %v1054, 8
        %v1056 = vadd.s32 %v1054, 16
        %v1057 = vadd.s32 %v1054, 24
        %v1058 = vadd.s32 %v1054, 32
        %v1059 = vadd.s32 %v1054, 40
        %v1060 = vadd.s32 %v1054, 48
        %v1061 = vadd.s32 %v1054, 56
        %v1062 = vadd.s32 %v1054, 64
        %v1063 = vadd.s32 %v1054, 72
        %v1064 = vadd.s32 %v1054, 80
        %v1065 = vadd.s32 %v1054, 88
        %v1066 = vadd.s32 %v1054, 96
        %v1067 = vadd.s32 %v1054, 104
        %v1068 = vadd.s32 %v1054, 112
        %v1069 = vadd.s32 %v1054, 120
        %v1070 = vperm.slane %v1052, 0
        %vm1071 = vcmp.eq.s32.totalorder %v1070, %v1054
        %vm1072 = vcmp.eq.s32.totalorder %v1070, %v1055
        %vm1073 = vcmp.eq.s32.totalorder %v1070, %v1056
        %vm1074 = vcmp.eq.s32.totalorder %v1070, %v1057
        %vm1075 = vcmp.eq.s32.totalorder %v1070, %v1058
        %vm1076 = vcmp.eq.s32.totalorder %v1070, %v1059
        %vm1077 = vcmp.eq.s32.totalorder %v1070, %v1060
        %vm1078 = vcmp.eq.s32.totalorder %v1070, %v1061
        %vm1079 = vcmp.eq.s32.totalorder %v1070, %v1062
        %vm1080 = vcmp.eq.s32.totalorder %v1070, %v1063
        %vm1081 = vcmp.eq.s32.totalorder %v1070, %v1064
        %vm1082 = vcmp.eq.s32.totalorder %v1070, %v1065
        %vm1083 = vcmp.eq.s32.totalorder %v1070, %v1066
        %vm1084 = vcmp.eq.s32.totalorder %v1070, %v1067
        %vm1085 = vcmp.eq.s32.totalorder %v1070, %v1068
        %vm1086 = vcmp.eq.s32.totalorder %v1070, %v1069
        %v1087 = vsel %vm1071, 1, 0
        %v1088 = vsel %vm1072, 1, 0
        %v1089 = vsel %vm1073, 1, 0
        %v1090 = vsel %vm1074, 1, 0
        %v1091 = vsel %vm1075, 1, 0
        %v1092 = vsel %vm1076, 1, 0
        %v1093 = vsel %vm1077, 1, 0
        %v1094 = vsel %vm1078, 1, 0
        %v1095 = vsel %vm1079, 1, 0
        %v1096 = vsel %vm1080, 1, 0
        %v1097 = vsel %vm1081, 1, 0
        %v1098 = vsel %vm1082, 1, 0
        %v1099 = vsel %vm1083, 1, 0
        %v1100 = vsel %vm1084, 1, 0
        %v1101 = vsel %vm1085, 1, 0
        %v1102 = vsel %vm1086, 1, 0
        %v1103 = vcvt.s32.f32 %v1087
        %v1104 = vcvt.s32.f32 %v1088
        %v1105 = vcvt.s32.f32 %v1089
        %v1106 = vcvt.s32.f32 %v1090
        %v1107 = vcvt.s32.f32 %v1091
        %v1108 = vcvt.s32.f32 %v1092
        %v1109 = vcvt.s32.f32 %v1093
        %v1110 = vcvt.s32.f32 %v1094
        %v1111 = vcvt.s32.f32 %v1095
        %v1112 = vcvt.s32.f32 %v1096
        %v1113 = vcvt.s32.f32 %v1097
        %v1114 = vcvt.s32.f32 %v1098
        %v1115 = vcvt.s32.f32 %v1099
        %v1116 = vcvt.s32.f32 %v1100
        %v1117 = vcvt.s32.f32 %v1101
        %v1118 = vcvt.s32.f32 %v1102
        %v1119 = vld [vmem:[#allocation3] sm:$0xff]
        %v1120 = vld [vmem:[#allocation3 + $0x8] sm:$0xff]
        %v1121 = vld [vmem:[#allocation3 + $0x10] sm:$0xff]
        %v1122 = vld [vmem:[#allocation3 + $0x18] sm:$0xff]
        %v1123 = vld [vmem:[#allocation3 + $0x20] sm:$0xff]
        %v1124 = vld [vmem:[#allocation3 + $0x28] sm:$0xff]
        %v1125 = vld [vmem:[#allocation3 + $0x30] sm:$0xff]
        %v1126 = vld [vmem:[#allocation3 + $0x38] sm:$0xff]
        %v1127 = vld [vmem:[#allocation3 + $0x40] sm:$0xff]
        %v1128 = vld [vmem:[#allocation3 + $0x48] sm:$0xff]
        %v1129 = vld [vmem:[#allocation3 + $0x50] sm:$0xff]
        %v1130 = vld [vmem:[#allocation3 + $0x58] sm:$0xff]
        %v1131 = vld [vmem:[#allocation3 + $0x60] sm:$0xff]
        %v1132 = vld [vmem:[#allocation3 + $0x68] sm:$0xff]
        %v1133 = vld [vmem:[#allocation3 + $0x70] sm:$0xff]
        %v1134 = vld [vmem:[#allocation3 + $0x78] sm:$0xff]
        %vm1135 = vcmask 130048
        %v1137 = vsel %vm1135, %v1103, 0
        %v1140 = vsel %vm1135, %v1104, 0
        %v1143 = vsel %vm1135, %v1105, 0
        %v1146 = vsel %vm1135, %v1106, 0
        %v1149 = vsel %vm1135, %v1107, 0
        %v1152 = vsel %vm1135, %v1108, 0
        %v1155 = vsel %vm1135, %v1109, 0
        %v1158 = vsel %vm1135, %v1110, 0
        %v1161 = vsel %vm1135, %v1111, 0
        %v1164 = vsel %vm1135, %v1112, 0
        %v1167 = vsel %vm1135, %v1113, 0
        %v1170 = vsel %vm1135, %v1114, 0
        %v1173 = vsel %vm1135, %v1115, 0
        %v1176 = vsel %vm1135, %v1116, 0
        %v1179 = vsel %vm1135, %v1117, 0
        %v1182 = vsel %vm1135, %v1118, 0
        %1184 = vmatpush.msra.mxu0 0.0
        %1185 = vmatpush.msra.mxu0 0.0
        %1186 = vmatpush.msra.mxu0 0.0
        %1187 = vmatpush.msra.mxu0 0.0
        %1188 = vmatpush.msra.mxu0 0.0
        %1189 = vmatpush.msra.mxu0 0.0
        %1190 = vmatpush.msra.mxu0 0.0
        %1191 = vmatpush.msra.mxu0 0.0
        %1192 = vmatpush.msra.mxu0 0.0
        %1193 = vmatpush.msra.mxu0 0.0
        %1194 = vmatpush.msra.mxu0 0.0
        %1195 = vmatpush.msra.mxu0 0.0
        %1196 = vmatpush.msra.mxu0 0.0
        %1197 = vmatpush.msra.mxu0 0.0
        %1198 = vmatpush.msra.mxu0 %v1050
        %1199 = vmatpush.msra.mxu0 %v1049
        %1200 = vmatmul.f32.gmra.mxu0 %v1137
        %v1201 = vpop.f32.mrf.mxu0
        %v1202 = vadd.f32 0.0, %v1201
        %1203 = vmatmul.f32.gmra.mxu0 %v1140
        %v1204 = vpop.f32.mrf.mxu0
        %v1205 = vadd.f32 0.0, %v1204
        %1206 = vmatmul.f32.gmra.mxu0 %v1143
        %v1207 = vpop.f32.mrf.mxu0
        %v1208 = vadd.f32 0.0, %v1207
        %1209 = vmatmul.f32.gmra.mxu0 %v1146
        %v1210 = vpop.f32.mrf.mxu0
        %v1211 = vadd.f32 0.0, %v1210
        %1212 = vmatmul.f32.gmra.mxu0 %v1149
        %v1213 = vpop.f32.mrf.mxu0
        %v1214 = vadd.f32 0.0, %v1213
        %1215 = vmatmul.f32.gmra.mxu0 %v1152
        %v1216 = vpop.f32.mrf.mxu0
        %v1217 = vadd.f32 0.0, %v1216
        %1218 = vmatmul.f32.gmra.mxu0 %v1155
        %v1219 = vpop.f32.mrf.mxu0
        %v1220 = vadd.f32 0.0, %v1219
        %1221 = vmatmul.f32.gmra.mxu0 %v1158
        %v1222 = vpop.f32.mrf.mxu0
        %v1223 = vadd.f32 0.0, %v1222
        %1224 = vmatmul.f32.gmra.mxu0 %v1161
        %v1225 = vpop.f32.mrf.mxu0
        %v1226 = vadd.f32 0.0, %v1225
        %1227 = vmatmul.f32.gmra.mxu0 %v1164
        %v1228 = vpop.f32.mrf.mxu0
        %v1229 = vadd.f32 0.0, %v1228
        %1230 = vmatmul.f32.gmra.mxu0 %v1167
        %v1231 = vpop.f32.mrf.mxu0
        %v1232 = vadd.f32 0.0, %v1231
        %1233 = vmatmul.f32.gmra.mxu0 %v1170
        %v1234 = vpop.f32.mrf.mxu0
        %v1235 = vadd.f32 0.0, %v1234
        %1236 = vmatmul.f32.gmra.mxu0 %v1173
        %v1237 = vpop.f32.mrf.mxu0
        %v1238 = vadd.f32 0.0, %v1237
        %1239 = vmatmul.f32.gmra.mxu0 %v1176
        %v1240 = vpop.f32.mrf.mxu0
        %v1241 = vadd.f32 0.0, %v1240
        %1242 = vmatmul.f32.gmra.mxu0 %v1179
        %v1243 = vpop.f32.mrf.mxu0
        %v1244 = vadd.f32 0.0, %v1243
        %1245 = vmatmul.f32.gmra.mxu0 %v1182
        %v1246 = vpop.f32.mrf.mxu0
        %v1247 = vadd.f32 0.0, %v1246
        %1248 = vdwg.mxu0
        %v1249 = vadd.f32 %v1119, %v1202
        %v1250 = vadd.f32 %v1120, %v1205
        %v1251 = vadd.f32 %v1121, %v1208
        %v1252 = vadd.f32 %v1122, %v1211
        %v1253 = vadd.f32 %v1123, %v1214
        %v1254 = vadd.f32 %v1124, %v1217
        %v1255 = vadd.f32 %v1125, %v1220
        %v1256 = vadd.f32 %v1126, %v1223
        %v1257 = vadd.f32 %v1127, %v1226
        %v1258 = vadd.f32 %v1128, %v1229
        %v1259 = vadd.f32 %v1129, %v1232
        %v1260 = vadd.f32 %v1130, %v1235
        %v1261 = vadd.f32 %v1131, %v1238
        %v1262 = vadd.f32 %v1132, %v1241
        %v1263 = vadd.f32 %v1133, %v1244
        %v1264 = vadd.f32 %v1134, %v1247
        %1265 = vst [vmem:[#allocation3] sm:$0xff] %v1249
        %1266 = vst [vmem:[#allocation3 + $0x8] sm:$0xff] %v1250
        %1267 = vst [vmem:[#allocation3 + $0x10] sm:$0xff] %v1251
        %1268 = vst [vmem:[#allocation3 + $0x18] sm:$0xff] %v1252
        %1269 = vst [vmem:[#allocation3 + $0x20] sm:$0xff] %v1253
        %1270 = vst [vmem:[#allocation3 + $0x28] sm:$0xff] %v1254
        %1271 = vst [vmem:[#allocation3 + $0x30] sm:$0xff] %v1255
        %1272 = vst [vmem:[#allocation3 + $0x38] sm:$0xff] %v1256
        %1273 = vst [vmem:[#allocation3 + $0x40] sm:$0xff] %v1257
        %1274 = vst [vmem:[#allocation3 + $0x48] sm:$0xff] %v1258
        %1275 = vst [vmem:[#allocation3 + $0x50] sm:$0xff] %v1259
        %1276 = vst [vmem:[#allocation3 + $0x58] sm:$0xff] %v1260
        %1277 = vst [vmem:[#allocation3 + $0x60] sm:$0xff] %v1261
        %1278 = vst [vmem:[#allocation3 + $0x68] sm:$0xff] %v1262
        %1279 = vst [vmem:[#allocation3 + $0x70] sm:$0xff] %v1263
        %1280 = vst [vmem:[#allocation3 + $0x78] sm:$0xff] %v1264
        // Predicated region
        $region61: #{tpu_custom_call.1} parent=43 // pred_check
          %p1281 = pneg %p343
        $region62: #{tpu_custom_call.1} parent=43 // pred_check_branch
          %1283 = sbr.rel (%p1281) target = $region64
        $region63: #{tpu_custom_call.1} parent=43 // pred_region
          %v1284 = vld [vmem:[#allocation3] sm:$0xff]
          %v1285 = vld [vmem:[#allocation3 + $0x8] sm:$0xff]
          %v1286 = vld [vmem:[#allocation3 + $0x10] sm:$0xff]
          %v1287 = vld [vmem:[#allocation3 + $0x18] sm:$0xff]
          %v1288 = vld [vmem:[#allocation3 + $0x20] sm:$0xff]
          %v1289 = vld [vmem:[#allocation3 + $0x28] sm:$0xff]
          %v1290 = vld [vmem:[#allocation3 + $0x30] sm:$0xff]
          %v1291 = vld [vmem:[#allocation3 + $0x38] sm:$0xff]
          %v1292 = vld [vmem:[#allocation3 + $0x40] sm:$0xff]
          %v1293 = vld [vmem:[#allocation3 + $0x48] sm:$0xff]
          %v1294 = vld [vmem:[#allocation3 + $0x50] sm:$0xff]
          %v1295 = vld [vmem:[#allocation3 + $0x58] sm:$0xff]
          %v1296 = vld [vmem:[#allocation3 + $0x60] sm:$0xff]
          %v1297 = vld [vmem:[#allocation3 + $0x68] sm:$0xff]
          %v1298 = vld [vmem:[#allocation3 + $0x70] sm:$0xff]
          %v1299 = vld [vmem:[#allocation3 + $0x78] sm:$0xff]
          %s1300 = scalar_lea.vmem %s292, 384 [#allocation7]
          %v1301 = vld [vmem:[%s1300] sm:$0xff]
          %v1302 = vld [vmem:[%s1300 + $0x8] sm:$0xff]
          %v1303 = vld [vmem:[%s1300 + $0x10] sm:$0xff]
          %v1304 = vld [vmem:[%s1300 + $0x18] sm:$0xff]
          %v1305 = vld [vmem:[%s1300 + $0x20] sm:$0xff]
          %v1306 = vld [vmem:[%s1300 + $0x28] sm:$0xff]
          %v1307 = vld [vmem:[%s1300 + $0x30] sm:$0xff]
          %v1308 = vld [vmem:[%s1300 + $0x38] sm:$0xff]
          %v1309 = vld [vmem:[%s1300 + $0x40] sm:$0xff]
          %v1310 = vld [vmem:[%s1300 + $0x48] sm:$0xff]
          %v1311 = vld [vmem:[%s1300 + $0x50] sm:$0xff]
          %v1312 = vld [vmem:[%s1300 + $0x58] sm:$0xff]
          %v1313 = vld [vmem:[%s1300 + $0x60] sm:$0xff]
          %v1314 = vld [vmem:[%s1300 + $0x68] sm:$0xff]
          %v1315 = vld [vmem:[%s1300 + $0x70] sm:$0xff]
          %v1316 = vld [vmem:[%s1300 + $0x78] sm:$0xff]
          %v1317 = vld [vmem:[%s341 + $0x2] sm:$0x1]
          %v1318 = vperm.slane %v1317, 0
          %1319 = vmatpush.msra.mxu0 %v1316
          %1320 = vmatpush.msra.mxu0 %v1315
          %1321 = vmatpush.msra.mxu0 %v1314
          %1322 = vmatpush.msra.mxu0 %v1313
          %1323 = vmatpush.msra.mxu0 %v1312
          %1324 = vmatpush.msra.mxu0 %v1311
          %1325 = vmatpush.msra.mxu0 %v1310
          %1326 = vmatpush.msra.mxu0 %v1309
          %1327 = vmatpush.msra.mxu0 %v1308
          %1328 = vmatpush.msra.mxu0 %v1307
          %1329 = vmatpush.msra.mxu0 %v1306
          %1330 = vmatpush.msra.mxu0 %v1305
          %1331 = vmatpush.msra.mxu0 %v1304
          %1332 = vmatpush.msra.mxu0 %v1303
          %1333 = vmatpush.msra.mxu0 %v1302
          %1334 = vmatpush.msra.mxu0 %v1301
          %1335 = vmatmul.f32.gmra.mxu0 %v1284
          %v1336 = vpop.f32.mrf.mxu0
          %v1337 = vadd.f32 %v1318, %v1336
          %1338 = vmatmul.f32.gmra.mxu0 %v1285
          %v1339 = vpop.f32.mrf.mxu0
          %v1340 = vadd.f32 %v1318, %v1339
          %1341 = vmatmul.f32.gmra.mxu0 %v1286
          %v1342 = vpop.f32.mrf.mxu0
          %v1343 = vadd.f32 %v1318, %v1342
          %1344 = vmatmul.f32.gmra.mxu0 %v1287
          %v1345 = vpop.f32.mrf.mxu0
          %v1346 = vadd.f32 %v1318, %v1345
          %1347 = vmatmul.f32.gmra.mxu0 %v1288
          %v1348 = vpop.f32.mrf.mxu0
          %v1349 = vadd.f32 %v1318, %v1348
          %1350 = vmatmul.f32.gmra.mxu0 %v1289
          %v1351 = vpop.f32.mrf.mxu0
          %v1352 = vadd.f32 %v1318, %v1351
          %1353 = vmatmul.f32.gmra.mxu0 %v1290
          %v1354 = vpop.f32.mrf.mxu0
          %v1355 = vadd.f32 %v1318, %v1354
          %1356 = vmatmul.f32.gmra.mxu0 %v1291
          %v1357 = vpop.f32.mrf.mxu0
          %v1358 = vadd.f32 %v1318, %v1357
          %1359 = vmatmul.f32.gmra.mxu0 %v1292
          %v1360 = vpop.f32.mrf.mxu0
          %v1361 = vadd.f32 %v1318, %v1360
          %1362 = vmatmul.f32.gmra.mxu0 %v1293
          %v1363 = vpop.f32.mrf.mxu0
          %v1364 = vadd.f32 %v1318, %v1363
          %1365 = vmatmul.f32.gmra.mxu0 %v1294
          %v1366 = vpop.f32.mrf.mxu0
          %v1367 = vadd.f32 %v1318, %v1366
          %1368 = vmatmul.f32.gmra.mxu0 %v1295
          %v1369 = vpop.f32.mrf.mxu0
          %v1370 = vadd.f32 %v1318, %v1369
          %1371 = vmatmul.f32.gmra.mxu0 %v1296
          %v1372 = vpop.f32.mrf.mxu0
          %v1373 = vadd.f32 %v1318, %v1372
          %1374 = vmatmul.f32.gmra.mxu0 %v1297
          %v1375 = vpop.f32.mrf.mxu0
          %v1376 = vadd.f32 %v1318, %v1375
          %1377 = vmatmul.f32.gmra.mxu0 %v1298
          %v1378 = vpop.f32.mrf.mxu0
          %v1379 = vadd.f32 %v1318, %v1378
          %1380 = vmatmul.f32.gmra.mxu0 %v1299
          %v1381 = vpop.f32.mrf.mxu0
          %v1382 = vadd.f32 %v1318, %v1381
          %1383 = vdwg.mxu0
          %v1384 = vmax.f32 %v1337, 0.0
          %v1385 = vmax.f32 %v1340, 0.0
          %v1386 = vmax.f32 %v1343, 0.0
          %v1387 = vmax.f32 %v1346, 0.0
          %v1388 = vmax.f32 %v1349, 0.0
          %v1389 = vmax.f32 %v1352, 0.0
          %v1390 = vmax.f32 %v1355, 0.0
          %v1391 = vmax.f32 %v1358, 0.0
          %v1392 = vmax.f32 %v1361, 0.0
          %v1393 = vmax.f32 %v1364, 0.0
          %v1394 = vmax.f32 %v1367, 0.0
          %v1395 = vmax.f32 %v1370, 0.0
          %v1396 = vmax.f32 %v1373, 0.0
          %v1397 = vmax.f32 %v1376, 0.0
          %v1398 = vmax.f32 %v1379, 0.0
          %v1399 = vmax.f32 %v1382, 0.0
          %vm1400 = vcmp.ne.f32.partialorder %v1337, %v1337
          %vm1401 = vcmp.ne.f32.partialorder %v1340, %v1340
          %vm1402 = vcmp.ne.f32.partialorder %v1343, %v1343
          %vm1403 = vcmp.ne.f32.partialorder %v1346, %v1346
          %vm1404 = vcmp.ne.f32.partialorder %v1349, %v1349
          %vm1405 = vcmp.ne.f32.partialorder %v1352, %v1352
          %vm1406 = vcmp.ne.f32.partialorder %v1355, %v1355
          %vm1407 = vcmp.ne.f32.partialorder %v1358, %v1358
          %vm1408 = vcmp.ne.f32.partialorder %v1361, %v1361
          %vm1409 = vcmp.ne.f32.partialorder %v1364, %v1364
          %vm1410 = vcmp.ne.f32.partialorder %v1367, %v1367
          %vm1411 = vcmp.ne.f32.partialorder %v1370, %v1370
          %vm1412 = vcmp.ne.f32.partialorder %v1373, %v1373
          %vm1413 = vcmp.ne.f32.partialorder %v1376, %v1376
          %vm1414 = vcmp.ne.f32.partialorder %v1379, %v1379
          %vm1415 = vcmp.ne.f32.partialorder %v1382, %v1382
          %v1416 = vadd.f32 %v1337, 0.0
          %v1417 = vadd.f32 %v1340, 0.0
          %v1418 = vadd.f32 %v1343, 0.0
          %v1419 = vadd.f32 %v1346, 0.0
          %v1420 = vadd.f32 %v1349, 0.0
          %v1421 = vadd.f32 %v1352, 0.0
          %v1422 = vadd.f32 %v1355, 0.0
          %v1423 = vadd.f32 %v1358, 0.0
          %v1424 = vadd.f32 %v1361, 0.0
          %v1425 = vadd.f32 %v1364, 0.0
          %v1426 = vadd.f32 %v1367, 0.0
          %v1427 = vadd.f32 %v1370, 0.0
          %v1428 = vadd.f32 %v1373, 0.0
          %v1429 = vadd.f32 %v1376, 0.0
          %v1430 = vadd.f32 %v1379, 0.0
          %v1431 = vadd.f32 %v1382, 0.0
          %v1432 = vand.u32 2147483647, %v1337
          %v1433 = vand.u32 2147483647, %v1340
          %v1434 = vand.u32 2147483647, %v1343
          %v1435 = vand.u32 2147483647, %v1346
          %v1436 = vand.u32 2147483647, %v1349
          %v1437 = vand.u32 2147483647, %v1352
          %v1438 = vand.u32 2147483647, %v1355
          %v1439 = vand.u32 2147483647, %v1358
          %v1440 = vand.u32 2147483647, %v1361
          %v1441 = vand.u32 2147483647, %v1364
          %v1442 = vand.u32 2147483647, %v1367
          %v1443 = vand.u32 2147483647, %v1370
          %v1444 = vand.u32 2147483647, %v1373
          %v1445 = vand.u32 2147483647, %v1376
          %v1446 = vand.u32 2147483647, %v1379
          %v1447 = vand.u32 2147483647, %v1382
          %v1448 = vsub.f32 0.0, %v1432
          %v1449 = vsub.f32 0.0, %v1433
          %v1450 = vsub.f32 0.0, %v1434
          %v1451 = vsub.f32 0.0, %v1435
          %v1452 = vsub.f32 0.0, %v1436
          %v1453 = vsub.f32 0.0, %v1437
          %v1454 = vsub.f32 0.0, %v1438
          %v1455 = vsub.f32 0.0, %v1439
          %v1456 = vsub.f32 0.0, %v1440
          %v1457 = vsub.f32 0.0, %v1441
          %v1458 = vsub.f32 0.0, %v1442
          %v1459 = vsub.f32 0.0, %v1443
          %v1460 = vsub.f32 0.0, %v1444
          %v1461 = vsub.f32 0.0, %v1445
          %v1462 = vsub.f32 0.0, %v1446
          %v1463 = vsub.f32 0.0, %v1447
          %v1464 = vmul.f32 %v1448, 1.442695
          %v1465 = vpow.pop %v1464
          %v1466 = vmul.f32 %v1449, 1.442695
          %v1467 = vpow.pop %v1466
          %v1468 = vmul.f32 %v1450, 1.442695
          %v1469 = vpow.pop %v1468
          %v1470 = vmul.f32 %v1451, 1.442695
          %v1471 = vpow.pop %v1470
          %v1472 = vmul.f32 %v1452, 1.442695
          %v1473 = vpow.pop %v1472
          %v1474 = vmul.f32 %v1453, 1.442695
          %v1475 = vpow.pop %v1474
          %v1476 = vmul.f32 %v1454, 1.442695
          %v1477 = vpow.pop %v1476
          %v1478 = vmul.f32 %v1455, 1.442695
          %v1479 = vpow.pop %v1478
          %v1480 = vmul.f32 %v1456, 1.442695
          %v1481 = vpow.pop %v1480
          %v1482 = vmul.f32 %v1457, 1.442695
          %v1483 = vpow.pop %v1482
          %v1484 = vmul.f32 %v1458, 1.442695
          %v1485 = vpow.pop %v1484
          %v1486 = vmul.f32 %v1459, 1.442695
          %v1487 = vpow.pop %v1486
          %v1488 = vmul.f32 %v1460, 1.442695
          %v1489 = vpow.pop %v1488
          %v1490 = vmul.f32 %v1461, 1.442695
          %v1491 = vpow.pop %v1490
          %v1492 = vmul.f32 %v1462, 1.442695
          %v1493 = vpow.pop %v1492
          %v1494 = vmul.f32 %v1463, 1.442695
          %v1495 = vpow.pop %v1494
          %v1496 = vadd.f32 %v1465, 1.0
          %v1497 = vlog2.pop %v1496
          %v1498 = vmul.f32 %v1497, 0.6931472
          %v1499 = vmul.f32 -0.5, %v1465
          %v1500 = vadd.f32 %v1499, 1.0
          %v1501 = vmul.f32 %v1500, %v1465
          %v1502 = vand.u32 2147483647, %v1465
          %vm1503 = vcmp.lt.f32.partialorder %v1502, 0.0004427343
          %v1504 = vsel %vm1503, %v1501, %v1498
          %v1505 = vadd.f32 %v1467, 1.0
          %v1506 = vlog2.pop %v1505
          %v1507 = vmul.f32 %v1506, 0.6931472
          %v1508 = vmul.f32 -0.5, %v1467
          %v1509 = vadd.f32 %v1508, 1.0
          %v1510 = vmul.f32 %v1509, %v1467
          %v1511 = vand.u32 2147483647, %v1467
          %vm1512 = vcmp.lt.f32.partialorder %v1511, 0.0004427343
          %v1513 = vsel %vm1512, %v1510, %v1507
          %v1514 = vadd.f32 %v1469, 1.0
          %v1515 = vlog2.pop %v1514
          %v1516 = vmul.f32 %v1515, 0.6931472
          %v1517 = vmul.f32 -0.5, %v1469
          %v1518 = vadd.f32 %v1517, 1.0
          %v1519 = vmul.f32 %v1518, %v1469
          %v1520 = vand.u32 2147483647, %v1469
          %vm1521 = vcmp.lt.f32.partialorder %v1520, 0.0004427343
          %v1522 = vsel %vm1521, %v1519, %v1516
          %v1523 = vadd.f32 %v1471, 1.0
          %v1524 = vlog2.pop %v1523
          %v1525 = vmul.f32 %v1524, 0.6931472
          %v1526 = vmul.f32 -0.5, %v1471
          %v1527 = vadd.f32 %v1526, 1.0
          %v1528 = vmul.f32 %v1527, %v1471
          %v1529 = vand.u32 2147483647, %v1471
          %vm1530 = vcmp.lt.f32.partialorder %v1529, 0.0004427343
          %v1531 = vsel %vm1530, %v1528, %v1525
          %v1532 = vadd.f32 %v1473, 1.0
          %v1533 = vlog2.pop %v1532
          %v1534 = vmul.f32 %v1533, 0.6931472
          %v1535 = vmul.f32 -0.5, %v1473
          %v1536 = vadd.f32 %v1535, 1.0
          %v1537 = vmul.f32 %v1536, %v1473
          %v1538 = vand.u32 2147483647, %v1473
          %vm1539 = vcmp.lt.f32.partialorder %v1538, 0.0004427343
          %v1540 = vsel %vm1539, %v1537, %v1534
          %v1541 = vadd.f32 %v1475, 1.0
          %v1542 = vlog2.pop %v1541
          %v1543 = vmul.f32 %v1542, 0.6931472
          %v1544 = vmul.f32 -0.5, %v1475
          %v1545 = vadd.f32 %v1544, 1.0
          %v1546 = vmul.f32 %v1545, %v1475
          %v1547 = vand.u32 2147483647, %v1475
          %vm1548 = vcmp.lt.f32.partialorder %v1547, 0.0004427343
          %v1549 = vsel %vm1548, %v1546, %v1543
          %v1550 = vadd.f32 %v1477, 1.0
          %v1551 = vlog2.pop %v1550
          %v1552 = vmul.f32 %v1551, 0.6931472
          %v1553 = vmul.f32 -0.5, %v1477
          %v1554 = vadd.f32 %v1553, 1.0
          %v1555 = vmul.f32 %v1554, %v1477
          %v1556 = vand.u32 2147483647, %v1477
          %vm1557 = vcmp.lt.f32.partialorder %v1556, 0.0004427343
          %v1558 = vsel %vm1557, %v1555, %v1552
          %v1559 = vadd.f32 %v1479, 1.0
          %v1560 = vlog2.pop %v1559
          %v1561 = vmul.f32 %v1560, 0.6931472
          %v1562 = vmul.f32 -0.5, %v1479
          %v1563 = vadd.f32 %v1562, 1.0
          %v1564 = vmul.f32 %v1563, %v1479
          %v1565 = vand.u32 2147483647, %v1479
          %vm1566 = vcmp.lt.f32.partialorder %v1565, 0.0004427343
          %v1567 = vsel %vm1566, %v1564, %v1561
          %v1568 = vadd.f32 %v1481, 1.0
          %v1569 = vlog2.pop %v1568
          %v1570 = vmul.f32 %v1569, 0.6931472
          %v1571 = vmul.f32 -0.5, %v1481
          %v1572 = vadd.f32 %v1571, 1.0
          %v1573 = vmul.f32 %v1572, %v1481
          %v1574 = vand.u32 2147483647, %v1481
          %vm1575 = vcmp.lt.f32.partialorder %v1574, 0.0004427343
          %v1576 = vsel %vm1575, %v1573, %v1570
          %v1577 = vadd.f32 %v1483, 1.0
          %v1578 = vlog2.pop %v1577
          %v1579 = vmul.f32 %v1578, 0.6931472
          %v1580 = vmul.f32 -0.5, %v1483
          %v1581 = vadd.f32 %v1580, 1.0
          %v1582 = vmul.f32 %v1581, %v1483
          %v1583 = vand.u32 2147483647, %v1483
          %vm1584 = vcmp.lt.f32.partialorder %v1583, 0.0004427343
          %v1585 = vsel %vm1584, %v1582, %v1579
          %v1586 = vadd.f32 %v1485, 1.0
          %v1587 = vlog2.pop %v1586
          %v1588 = vmul.f32 %v1587, 0.6931472
          %v1589 = vmul.f32 -0.5, %v1485
          %v1590 = vadd.f32 %v1589, 1.0
          %v1591 = vmul.f32 %v1590, %v1485
          %v1592 = vand.u32 2147483647, %v1485
          %vm1593 = vcmp.lt.f32.partialorder %v1592, 0.0004427343
          %v1594 = vsel %vm1593, %v1591, %v1588
          %v1595 = vadd.f32 %v1487, 1.0
          %v1596 = vlog2.pop %v1595
          %v1597 = vmul.f32 %v1596, 0.6931472
          %v1598 = vmul.f32 -0.5, %v1487
          %v1599 = vadd.f32 %v1598, 1.0
          %v1600 = vmul.f32 %v1599, %v1487
          %v1601 = vand.u32 2147483647, %v1487
          %vm1602 = vcmp.lt.f32.partialorder %v1601, 0.0004427343
          %v1603 = vsel %vm1602, %v1600, %v1597
          %v1604 = vadd.f32 %v1489, 1.0
          %v1605 = vlog2.pop %v1604
          %v1606 = vmul.f32 %v1605, 0.6931472
          %v1607 = vmul.f32 -0.5, %v1489
          %v1608 = vadd.f32 %v1607, 1.0
          %v1609 = vmul.f32 %v1608, %v1489
          %v1610 = vand.u32 2147483647, %v1489
          %vm1611 = vcmp.lt.f32.partialorder %v1610, 0.0004427343
          %v1612 = vsel %vm1611, %v1609, %v1606
          %v1613 = vadd.f32 %v1491, 1.0
          %v1614 = vlog2.pop %v1613
          %v1615 = vmul.f32 %v1614, 0.6931472
          %v1616 = vmul.f32 -0.5, %v1491
          %v1617 = vadd.f32 %v1616, 1.0
          %v1618 = vmul.f32 %v1617, %v1491
          %v1619 = vand.u32 2147483647, %v1491
          %vm1620 = vcmp.lt.f32.partialorder %v1619, 0.0004427343
          %v1621 = vsel %vm1620, %v1618, %v1615
          %v1622 = vadd.f32 %v1493, 1.0
          %v1623 = vlog2.pop %v1622
          %v1624 = vmul.f32 %v1623, 0.6931472
          %v1625 = vmul.f32 -0.5, %v1493
          %v1626 = vadd.f32 %v1625, 1.0
          %v1627 = vmul.f32 %v1626, %v1493
          %v1628 = vand.u32 2147483647, %v1493
          %vm1629 = vcmp.lt.f32.partialorder %v1628, 0.0004427343
          %v1630 = vsel %vm1629, %v1627, %v1624
          %v1631 = vadd.f32 %v1495, 1.0
          %v1632 = vlog2.pop %v1631
          %v1633 = vmul.f32 %v1632, 0.6931472
          %v1634 = vmul.f32 -0.5, %v1495
          %v1635 = vadd.f32 %v1634, 1.0
          %v1636 = vmul.f32 %v1635, %v1495
          %v1637 = vand.u32 2147483647, %v1495
          %vm1638 = vcmp.lt.f32.partialorder %v1637, 0.0004427343
          %v1639 = vsel %vm1638, %v1636, %v1633
          %v1640 = vadd.f32 %v1384, %v1504
          %v1641 = vadd.f32 %v1385, %v1513
          %v1642 = vadd.f32 %v1386, %v1522
          %v1643 = vadd.f32 %v1387, %v1531
          %v1644 = vadd.f32 %v1388, %v1540
          %v1645 = vadd.f32 %v1389, %v1549
          %v1646 = vadd.f32 %v1390, %v1558
          %v1647 = vadd.f32 %v1391, %v1567
          %v1648 = vadd.f32 %v1392, %v1576
          %v1649 = vadd.f32 %v1393, %v1585
          %v1650 = vadd.f32 %v1394, %v1594
          %v1651 = vadd.f32 %v1395, %v1603
          %v1652 = vadd.f32 %v1396, %v1612
          %v1653 = vadd.f32 %v1397, %v1621
          %v1654 = vadd.f32 %v1398, %v1630
          %v1655 = vadd.f32 %v1399, %v1639
          %v1656 = vsel %vm1400, %v1416, %v1640
          %v1657 = vsel %vm1401, %v1417, %v1641
          %v1658 = vsel %vm1402, %v1418, %v1642
          %v1659 = vsel %vm1403, %v1419, %v1643
          %v1660 = vsel %vm1404, %v1420, %v1644
          %v1661 = vsel %vm1405, %v1421, %v1645
          %v1662 = vsel %vm1406, %v1422, %v1646
          %v1663 = vsel %vm1407, %v1423, %v1647
          %v1664 = vsel %vm1408, %v1424, %v1648
          %v1665 = vsel %vm1409, %v1425, %v1649
          %v1666 = vsel %vm1410, %v1426, %v1650
          %v1667 = vsel %vm1411, %v1427, %v1651
          %v1668 = vsel %vm1412, %v1428, %v1652
          %v1669 = vsel %vm1413, %v1429, %v1653
          %v1670 = vsel %vm1414, %v1430, %v1654
          %v1671 = vsel %vm1415, %v1431, %v1655
          %v1672 = vsub.f32 %v1656, 0.6931472
          %v1673 = vsub.f32 %v1657, 0.6931472
          %v1674 = vsub.f32 %v1658, 0.6931472
          %v1675 = vsub.f32 %v1659, 0.6931472
          %v1676 = vsub.f32 %v1660, 0.6931472
          %v1677 = vsub.f32 %v1661, 0.6931472
          %v1678 = vsub.f32 %v1662, 0.6931472
          %v1679 = vsub.f32 %v1663, 0.6931472
          %v1680 = vsub.f32 %v1664, 0.6931472
          %v1681 = vsub.f32 %v1665, 0.6931472
          %v1682 = vsub.f32 %v1666, 0.6931472
          %v1683 = vsub.f32 %v1667, 0.6931472
          %v1684 = vsub.f32 %v1668, 0.6931472
          %v1685 = vsub.f32 %v1669, 0.6931472
          %v1686 = vsub.f32 %v1670, 0.6931472
          %v1687 = vsub.f32 %v1671, 0.6931472
          %v1688 = vld [vmem:[#allocation9] sm:$0xff]
          %v1689 = vld [vmem:[#allocation9 + $0x8] sm:$0xff]
          %v1690 = vld [vmem:[#allocation9 + $0x10] sm:$0xff]
          %v1691 = vld [vmem:[#allocation9 + $0x18] sm:$0xff]
          %v1692 = vld [vmem:[#allocation9 + $0x20] sm:$0xff]
          %v1693 = vld [vmem:[#allocation9 + $0x28] sm:$0xff]
          %v1694 = vld [vmem:[#allocation9 + $0x30] sm:$0xff]
          %v1695 = vld [vmem:[#allocation9 + $0x38] sm:$0xff]
          %v1696 = vld [vmem:[#allocation9 + $0x40] sm:$0xff]
          %v1697 = vld [vmem:[#allocation9 + $0x48] sm:$0xff]
          %v1698 = vld [vmem:[#allocation9 + $0x50] sm:$0xff]
          %v1699 = vld [vmem:[#allocation9 + $0x58] sm:$0xff]
          %v1700 = vld [vmem:[#allocation9 + $0x60] sm:$0xff]
          %v1701 = vld [vmem:[#allocation9 + $0x68] sm:$0xff]
          %v1702 = vld [vmem:[#allocation9 + $0x70] sm:$0xff]
          %v1703 = vld [vmem:[#allocation9 + $0x78] sm:$0xff]
          %s1704 = scalar_lea.vmem %s292, 512 [#allocation7]
          %v1705 = vld [vmem:[%s1704] sm:$0xff]
          %v1706 = vld [vmem:[%s1704 + $0x8] sm:$0xff]
          %v1707 = vld [vmem:[%s1704 + $0x10] sm:$0xff]
          %v1708 = vld [vmem:[%s1704 + $0x18] sm:$0xff]
          %v1709 = vld [vmem:[%s1704 + $0x20] sm:$0xff]
          %v1710 = vld [vmem:[%s1704 + $0x28] sm:$0xff]
          %v1711 = vld [vmem:[%s1704 + $0x30] sm:$0xff]
          %v1712 = vld [vmem:[%s1704 + $0x38] sm:$0xff]
          %v1713 = vld [vmem:[%s1704 + $0x40] sm:$0xff]
          %v1714 = vld [vmem:[%s1704 + $0x48] sm:$0xff]
          %v1715 = vld [vmem:[%s1704 + $0x50] sm:$0xff]
          %v1716 = vld [vmem:[%s1704 + $0x58] sm:$0xff]
          %v1717 = vld [vmem:[%s1704 + $0x60] sm:$0xff]
          %v1718 = vld [vmem:[%s1704 + $0x68] sm:$0xff]
          %v1719 = vld [vmem:[%s1704 + $0x70] sm:$0xff]
          %v1720 = vld [vmem:[%s1704 + $0x78] sm:$0xff]
          %1721 = vmatpush.msra.mxu0 %v1720
          %1722 = vmatpush.msra.mxu0 %v1719
          %1723 = vmatpush.msra.mxu0 %v1718
          %1724 = vmatpush.msra.mxu0 %v1717
          %1725 = vmatpush.msra.mxu0 %v1716
          %1726 = vmatpush.msra.mxu0 %v1715
          %1727 = vmatpush.msra.mxu0 %v1714
          %1728 = vmatpush.msra.mxu0 %v1713
          %1729 = vmatpush.msra.mxu0 %v1712
          %1730 = vmatpush.msra.mxu0 %v1711
          %1731 = vmatpush.msra.mxu0 %v1710
          %1732 = vmatpush.msra.mxu0 %v1709
          %1733 = vmatpush.msra.mxu0 %v1708
          %1734 = vmatpush.msra.mxu0 %v1707
          %1735 = vmatpush.msra.mxu0 %v1706
          %1736 = vmatpush.msra.mxu0 %v1705
          %1737 = vmatmul.f32.gmra.mxu0 %v1672
          %v1738 = vpop.f32.mrf.mxu0
          %v1739 = vadd.f32 0.0, %v1738
          %1740 = vmatmul.f32.gmra.mxu0 %v1673
          %v1741 = vpop.f32.mrf.mxu0
          %v1742 = vadd.f32 0.0, %v1741
          %1743 = vmatmul.f32.gmra.mxu0 %v1674
          %v1744 = vpop.f32.mrf.mxu0
          %v1745 = vadd.f32 0.0, %v1744
          %1746 = vmatmul.f32.gmra.mxu0 %v1675
          %v1747 = vpop.f32.mrf.mxu0
          %v1748 = vadd.f32 0.0, %v1747
          %1749 = vmatmul.f32.gmra.mxu0 %v1676
          %v1750 = vpop.f32.mrf.mxu0
          %v1751 = vadd.f32 0.0, %v1750
          %1752 = vmatmul.f32.gmra.mxu0 %v1677
          %v1753 = vpop.f32.mrf.mxu0
          %v1754 = vadd.f32 0.0, %v1753
          %1755 = vmatmul.f32.gmra.mxu0 %v1678
          %v1756 = vpop.f32.mrf.mxu0
          %v1757 = vadd.f32 0.0, %v1756
          %1758 = vmatmul.f32.gmra.mxu0 %v1679
          %v1759 = vpop.f32.mrf.mxu0
          %v1760 = vadd.f32 0.0, %v1759
          %1761 = vmatmul.f32.gmra.mxu0 %v1680
          %v1762 = vpop.f32.mrf.mxu0
          %v1763 = vadd.f32 0.0, %v1762
          %1764 = vmatmul.f32.gmra.mxu0 %v1681
          %v1765 = vpop.f32.mrf.mxu0
          %v1766 = vadd.f32 0.0, %v1765
          %1767 = vmatmul.f32.gmra.mxu0 %v1682
          %v1768 = vpop.f32.mrf.mxu0
          %v1769 = vadd.f32 0.0, %v1768
          %1770 = vmatmul.f32.gmra.mxu0 %v1683
          %v1771 = vpop.f32.mrf.mxu0
          %v1772 = vadd.f32 0.0, %v1771
          %1773 = vmatmul.f32.gmra.mxu0 %v1684
          %v1774 = vpop.f32.mrf.mxu0
          %v1775 = vadd.f32 0.0, %v1774
          %1776 = vmatmul.f32.gmra.mxu0 %v1685
          %v1777 = vpop.f32.mrf.mxu0
          %v1778 = vadd.f32 0.0, %v1777
          %1779 = vmatmul.f32.gmra.mxu0 %v1686
          %v1780 = vpop.f32.mrf.mxu0
          %v1781 = vadd.f32 0.0, %v1780
          %1782 = vmatmul.f32.gmra.mxu0 %v1687
          %v1783 = vpop.f32.mrf.mxu0
          %v1784 = vadd.f32 0.0, %v1783
          %1785 = vdwg.mxu0
          %v1786 = vadd.f32 %v1688, %v1739
          %v1787 = vadd.f32 %v1689, %v1742
          %v1788 = vadd.f32 %v1690, %v1745
          %v1789 = vadd.f32 %v1691, %v1748
          %v1790 = vadd.f32 %v1692, %v1751
          %v1791 = vadd.f32 %v1693, %v1754
          %v1792 = vadd.f32 %v1694, %v1757
          %v1793 = vadd.f32 %v1695, %v1760
          %v1794 = vadd.f32 %v1696, %v1763
          %v1795 = vadd.f32 %v1697, %v1766
          %v1796 = vadd.f32 %v1698, %v1769
          %v1797 = vadd.f32 %v1699, %v1772
          %v1798 = vadd.f32 %v1700, %v1775
          %v1799 = vadd.f32 %v1701, %v1778
          %v1800 = vadd.f32 %v1702, %v1781
          %v1801 = vadd.f32 %v1703, %v1784
          %v1802 = vld [vmem:[%s341 + $0x3] sm:$0x1]
          %v1803 = vperm.slane %v1802, 0
          %v1804 = vadd.f32 %v1786, %v1803
          %v1805 = vadd.f32 %v1787, %v1803
          %v1806 = vadd.f32 %v1788, %v1803
          %v1807 = vadd.f32 %v1789, %v1803
          %v1808 = vadd.f32 %v1790, %v1803
          %v1809 = vadd.f32 %v1791, %v1803
          %v1810 = vadd.f32 %v1792, %v1803
          %v1811 = vadd.f32 %v1793, %v1803
          %v1812 = vadd.f32 %v1794, %v1803
          %v1813 = vadd.f32 %v1795, %v1803
          %v1814 = vadd.f32 %v1796, %v1803
          %v1815 = vadd.f32 %v1797, %v1803
          %v1816 = vadd.f32 %v1798, %v1803
          %v1817 = vadd.f32 %v1799, %v1803
          %v1818 = vadd.f32 %v1800, %v1803
          %v1819 = vadd.f32 %v1801, %v1803
          %1820 = vst [vmem:[#allocation9] sm:$0xff] %v1804
          %1821 = vst [vmem:[#allocation9 + $0x8] sm:$0xff] %v1805
          %1822 = vst [vmem:[#allocation9 + $0x10] sm:$0xff] %v1806
          %1823 = vst [vmem:[#allocation9 + $0x18] sm:$0xff] %v1807
          %1824 = vst [vmem:[#allocation9 + $0x20] sm:$0xff] %v1808
          %1825 = vst [vmem:[#allocation9 + $0x28] sm:$0xff] %v1809
          %1826 = vst [vmem:[#allocation9 + $0x30] sm:$0xff] %v1810
          %1827 = vst [vmem:[#allocation9 + $0x38] sm:$0xff] %v1811
          %1828 = vst [vmem:[#allocation9 + $0x40] sm:$0xff] %v1812
          %1829 = vst [vmem:[#allocation9 + $0x48] sm:$0xff] %v1813
          %1830 = vst [vmem:[#allocation9 + $0x50] sm:$0xff] %v1814
          %1831 = vst [vmem:[#allocation9 + $0x58] sm:$0xff] %v1815
          %1832 = vst [vmem:[#allocation9 + $0x60] sm:$0xff] %v1816
          %1833 = vst [vmem:[#allocation9 + $0x68] sm:$0xff] %v1817
          %1834 = vst [vmem:[#allocation9 + $0x70] sm:$0xff] %v1818
          %1835 = vst [vmem:[#allocation9 + $0x78] sm:$0xff] %v1819
        $region64: #{tpu_custom_call.1} parent=43 // pred_fallthru
          _
        // Predicated region
        $region65: #{tpu_custom_call.1} parent=43 // pred_check
          %p1836 = pneg %p193
        $region66: #{tpu_custom_call.1} parent=43 // pred_check_branch
          %1838 = sbr.rel (%p1836) target = $region68
        $region67: #{tpu_custom_call.1} parent=43 // pred_region
          %1840 = vsyncadd [#allocation6], 0
          %s1841 = sshll.u32 [#allocation9], 4
          %s1842 = int_to_ptr.vmem [resolvable:$true] %s1841
          %s1843 = sshll.u32 %s6, 4
          %s1844 = int_to_ptr.hbm [resolvable:$true] %s1843
          %1849 = dma.vmem_to_hbm [thread:$0]  %s1842, 2048, %s1844, [#allocation6], 128, 128, 8
        $region68: #{tpu_custom_call.1} parent=43 // pred_fallthru
          _
        // Predicated region
        $region69: #{tpu_custom_call.1} parent=43 // pred_check
          %p1850 = pneg %p193
        $region70: #{tpu_custom_call.1} parent=43 // pred_check_branch
          %1852 = sbr.rel (%p1850) target = $region72
        $region71: #{tpu_custom_call.1} parent=43 // pred_region
          %1854 = dma.done [#allocation6], 2048
        $region72: #{tpu_custom_call.1} parent=43 // pred_fallthru
          _
      $region44: #{tpu_custom_call.1} parent=5 // pred_fallthru
        _
      %p1855 = scmp.le.s32.totalorder 2, %s17
      // Predicated region
      $region73: #{tpu_custom_call.1} parent=5 // pred_check
        %p1856 = pneg %p1855
      $region74: #{tpu_custom_call.1} parent=5 // pred_check_branch
        %1858 = sbr.rel (%p1856) target = $region76
      $region75: #{tpu_custom_call.1} parent=5 // pred_region
        %s1859 = ssub.s32 %s17, 2
      $region76: #{tpu_custom_call.1} parent=5 // pred_fallthru
        _
    $region6: #{tpu_custom_call.1} parent=1 // loop_footer
      %s21 = sadd.s32 1, %s17
    $region7: #{tpu_custom_call.1} parent=1 // loop_footer_branch
      %16 = sbr.rel target = $region3
    $region8: #{tpu_custom_call.1} parent=1 // loop_exit
      _
    %1860 = vsyncpa [#allocation5], 1
    %s1861 = scalar_lea.sflag [#allocation5], 1
    %1862 = vsyncpa %s1861, 1
    %1863 = vsyncpa [#allocation8], 1
    %s1864 = scalar_lea.sflag [#allocation8], 1
    %1865 = vsyncpa %s1864, 1
    %1866 = vsyncpa [#allocation6], 1
    %s1867 = scalar_lea.sflag [#allocation6], 1
    %1868 = vsyncpa %s1867, 1

</llo_original>
